<compile_context>
chip_gen: v5e
topology: v5e:2x2
jax: 0.10.0
libtpu: 0.0.40
codegen_flags: <defaults>
</compile_context>

<pallas_src>
import functools

import jax
import jax.numpy as jnp
from jax.experimental import pallas as pl
from jax.experimental.pallas import tpu as pltpu

D_IN = 41     # real input features
D_HID = 512
D_OUT = 12    # real output features
K_PAD = 128   # lane-padded input feature dim (column D_IN carries the 1.0 bias lane)
N_PAD = 128   # lane-padded output feature dim
MAX_TB = 512  # max batch-tile rows for large batches (sweepable 512-1024)


def _round_up(v, m):
    return ((v + m - 1) // m) * m


def _silu(x):
    # EUP-friendly SiLU: sigmoid(x) == 0.5 * (1 + tanh(x/2)) -> one tanh push
    # on the EUP instead of exp + divide on the VPU.
    return x * (0.5 * (jnp.tanh(x * 0.5) + 1.0))


def _default_act_dtype():
    """bf16 elementwise on chips with a bf16 VPU/EUP (v6e/v7x); f32 on v5e & older."""
    try:
        kind = jax.devices()[0].device_kind.lower()
    except Exception:
        return jnp.dtype(jnp.float32)
    for tag in ("v2", "v3", "v4", "v5"):
        if tag in kind:
            return jnp.dtype(jnp.float32)
    return jnp.dtype(jnp.bfloat16)


def _pick_tb(batch, max_tb=MAX_TB):
    """Adaptive batch tile: no padding waste for small B, 2+ tiles for v7x."""
    b8 = _round_up(max(batch, 1), 8)
    if b8 > max_tb:
        return max_tb
    if b8 >= 256:
        # Split into >= 2 tiles so the "parallel" batch axis can shard across
        # both TensorCores on v7x (harmless on single-TC v5e/v6e).
        return _round_up(pl.cdiv(b8, 2), 8)
    return b8


def mlp_kernel(x_ref,
               w1_ref,
               w2_ref, b2_ref,
               w3_ref, b3_ref,
               w4_ref, b4_ref,
               o_ref, *, act_dtype):
    # x_ref: (TB, K_PAD) bf16 batch tile; column D_IN is a constant 1.0 so the
    # layer-1 bias rides row D_IN of w1 (applied for free on the MXU).
    # Weights are bf16 and VMEM-resident across grid steps (constant index_map).
    # MXU accumulation is f32; bias-add + SiLU run in `act_dtype`.
    f32 = jnp.float32
    bf16 = jnp.bfloat16

    h = jnp.dot(x_ref[...], w1_ref[...], preferred_element_type=f32)
    h = _silu(h.astype(act_dtype))        # Dropout(p=0.5) == identity in eval mode

    h = jnp.dot(h.astype(bf16), w2_ref[...], preferred_element_type=f32)
    h = _silu(h.astype(act_dtype) + b2_ref[...].astype(act_dtype))

    h = jnp.dot(h.astype(bf16), w3_ref[...], preferred_element_type=f32)
    h = _silu(h.astype(act_dtype) + b3_ref[...].astype(act_dtype))

    out = jnp.dot(h.astype(bf16), w4_ref[...], preferred_element_type=f32) + b4_ref[...]
    o_ref[...] = out.astype(o_ref.dtype)


def prepare_params(params):
    """Pad lane-misaligned dims (41->128, 12->128), fold b1 into w1, cast to bf16."""
    (w1, b1, w2, b2, w3, b3, w4, b4) = params
    w1p = jnp.zeros((K_PAD, D_HID), jnp.float32)
    w1p = w1p.at[:D_IN, :].set(w1)
    w1p = w1p.at[D_IN, :].set(b1.reshape(-1))      # bias fold: x[:, D_IN] == 1.0
    w4p = jnp.zeros((D_HID, N_PAD), jnp.float32).at[:, :D_OUT].set(w4)
    b4p = jnp.zeros((1, N_PAD), jnp.float32).at[:, :D_OUT].set(b4)
    return (w1p.astype(jnp.bfloat16),
            w2.astype(jnp.bfloat16), b2.astype(jnp.float32),
            w3.astype(jnp.bfloat16), b3.astype(jnp.float32),
            w4p.astype(jnp.bfloat16), b4p)


@functools.partial(jax.jit, static_argnums=(2, 3, 4))
def _mlp_forward_impl(x, prepared, act_dtype, out_dtype, max_tb):
    (w1, w2, b2, w3, b3, w4, b4) = prepared
    x = x.reshape(x.shape[0], -1)                 # nn.Flatten
    B, F = x.shape
    assert F == D_IN, f"expected {D_IN} flattened features, got {F}"

    tb = _pick_tb(B, max_tb)
    grid_b = pl.cdiv(B, tb)
    b_pad = grid_b * tb

    # Lane-pad features 41 -> 128 (bf16, zero-filled); column D_IN = 1.0 so
    # the folded layer-1 bias is applied by the matmul itself.
    xp = jnp.zeros((b_pad, K_PAD), jnp.bfloat16)
    xp = xp.at[:, D_IN].set(1.0)
    xp = xp.at[:B, :D_IN].set(x.astype(jnp.bfloat16))

    flops = 2 * b_pad * (K_PAD * D_HID + 2 * D_HID * D_HID + D_HID * N_PAD)
    bytes_accessed = int(
        xp.size * xp.dtype.itemsize
        + b_pad * N_PAD * jnp.dtype(out_dtype).itemsize
        + sum(int(p.size) * p.dtype.itemsize for p in prepared))
    cost = pl.CostEstimate(flops=flops,
                           transcendentals=3 * b_pad * D_HID,
                           bytes_accessed=bytes_accessed)

    const = lambda i: (0, 0)
    kernel = functools.partial(mlp_kernel, act_dtype=act_dtype)
    out = pl.pallas_call(
        kernel,
        out_shape=jax.ShapeDtypeStruct((b_pad, N_PAD), out_dtype),
        grid=(grid_b,),
        in_specs=[
            pl.BlockSpec((tb, K_PAD), lambda i: (i, 0)),   # x batch tile
            pl.BlockSpec((K_PAD, D_HID), const),           # w1 (bias folded, resident)
            pl.BlockSpec((D_HID, D_HID), const),           # w2
            pl.BlockSpec((1, D_HID), const),               # b2
            pl.BlockSpec((D_HID, D_HID), const),           # w3
            pl.BlockSpec((1, D_HID), const),               # b3
            pl.BlockSpec((D_HID, N_PAD), const),           # w4
            pl.BlockSpec((1, N_PAD), const),               # b4
        ],
        out_specs=pl.BlockSpec((tb, N_PAD), lambda i: (i, 0)),
        compiler_params=pltpu.CompilerParams(
            dimension_semantics=("parallel",),
            vmem_limit_bytes=32 * 1024 * 1024),
        cost_estimate=cost,
    )(xp, w1, w2, b2, w3, b3, w4, b4)

    # Slice away batch padding and the lane padding of the output features.
    return out[:B, :D_OUT]


def mlp_forward(x, prepared, *, act_dtype=None, out_dtype=jnp.float32, max_tb=MAX_TB):
    """x: (B, ...) flattening to 41 features. Returns (B, 12) in `out_dtype`."""
    if act_dtype is None:
        act_dtype = _default_act_dtype()
    return _mlp_forward_impl(x, prepared, jnp.dtype(act_dtype),
                             jnp.dtype(out_dtype), int(max_tb))


def init_params(key):
    """PyTorch nn.Linear default init: U(-1/sqrt(fan_in), 1/sqrt(fan_in))."""
    dims = [(D_IN, D_HID), (D_HID, D_HID), (D_HID, D_HID), (D_HID, D_OUT)]
    params = []
    for (fan_in, fan_out) in dims:
        key, kw, kb = jax.random.split(key, 3)
        bound = 1.0 / (fan_in ** 0.5)
        # stored as (in, out) so the kernel computes x @ W (== x @ W_torch.T)
        w = jax.random.uniform(kw, (fan_in, fan_out), jnp.float32, -bound, bound)
        b = jax.random.uniform(kb, (1, fan_out), jnp.float32, -bound, bound)
        params.extend([w, b])
    return tuple(params)


def mlp_reference(x, params, act_dtype=jnp.float32):
    """Pure-JAX reference mirroring the kernel numerics (bf16 dot inputs,
    f32 accumulation, elementwise in act_dtype)."""
    (w1, b1, w2, b2, w3, b3, w4, b4) = params
    x = x.reshape(x.shape[0], -1)

    def dot(a, w):
        return jnp.dot(a.astype(jnp.bfloat16), w.astype(jnp.bfloat16),
                       preferred_element_type=jnp.float32)

    h = _silu((dot(x, w1) + b1).astype(act_dtype)).astype(jnp.float32)
    h = _silu((dot(h, w2) + b2).astype(act_dtype)).astype(jnp.float32)
    h = _silu((dot(h, w3) + b3).astype(act_dtype)).astype(jnp.float32)
    return dot(h, w4) + b4


if __name__ == "__main__":
    key = jax.random.PRNGKey(0)
    key, kx = jax.random.split(key)

    params = init_params(key)
    prepared = prepare_params(params)
    act_dtype = _default_act_dtype()

    # Small latency-critical batch (single 8-row tile) and a multi-tile batch
    # (exercises grid > 1, batch padding, and the dual-tile split used on v7x).
    for B in (8, 300):
        kx, kb = jax.random.split(kx)
        x = jax.random.normal(kb, (B, D_IN), dtype=jnp.float32)  # Flatten is a no-op for (B, 41)
        out = jax.block_until_ready(mlp_forward(x, prepared))
        assert out.shape == (B, D_OUT), out.shape

        ref = mlp_reference(x, params, act_dtype=act_dtype)
        max_err = float(jnp.max(jnp.abs(out - ref)))
        assert jnp.allclose(out, ref, atol=3e-2, rtol=3e-2), (B, max_err)

    print("KERNEL_OK")
</pallas_src>

<mosaic_0001>
module attributes {stable_mosaic.version = 11 : i64} {
  func.func @mlp_kernel(%arg0: i32, %arg1: memref<8x128xbf16, #tpu.memory_space<vmem>>, %arg2: memref<128x512xbf16, #tpu.memory_space<vmem>>, %arg3: memref<512x512xbf16, #tpu.memory_space<vmem>>, %arg4: memref<1x512xf32, #tpu.memory_space<vmem>>, %arg5: memref<512x512xbf16, #tpu.memory_space<vmem>>, %arg6: memref<1x512xf32, #tpu.memory_space<vmem>>, %arg7: memref<512x128xbf16, #tpu.memory_space<vmem>>, %arg8: memref<1x128xf32, #tpu.memory_space<vmem>>, %arg9: memref<8x128xf32, #tpu.memory_space<vmem>>) attributes {dimension_semantics = [#tpu.dimension_semantics<parallel>], iteration_bounds = array<i64: 1>, scalar_prefetch = 0 : i64, scratch_operands = 0 : i64, tpu.core_type = #tpu.core_type<tc>, window_params = [{transform_indices = @transform_0, window_bounds = array<i64: 8, 128>}, {pipeline_mode = #tpu.pipeline_mode<synchronous>, transform_indices = @transform_1, window_bounds = array<i64: 128, 512>}, {pipeline_mode = #tpu.pipeline_mode<synchronous>, transform_indices = @transform_2, window_bounds = array<i64: 512, 512>}, {pipeline_mode = #tpu.pipeline_mode<synchronous>, transform_indices = @transform_3, window_bounds = array<i64: 1, 512>}, {pipeline_mode = #tpu.pipeline_mode<synchronous>, transform_indices = @transform_4, window_bounds = array<i64: 512, 512>}, {pipeline_mode = #tpu.pipeline_mode<synchronous>, transform_indices = @transform_5, window_bounds = array<i64: 1, 512>}, {pipeline_mode = #tpu.pipeline_mode<synchronous>, transform_indices = @transform_6, window_bounds = array<i64: 512, 128>}, {pipeline_mode = #tpu.pipeline_mode<synchronous>, transform_indices = @transform_7, window_bounds = array<i64: 1, 128>}, {transform_indices = @transform_8, window_bounds = array<i64: 8, 128>}]} {
    %c0 = arith.constant 0 : index
    %c0_0 = arith.constant 0 : index
    %0 = vector.load %arg1[%c0, %c0_0] : memref<8x128xbf16, #tpu.memory_space<vmem>>, vector<8x128xbf16>
    %c0_1 = arith.constant 0 : index
    %c0_2 = arith.constant 0 : index
    %1 = vector.load %arg2[%c0_1, %c0_2] : memref<128x512xbf16, #tpu.memory_space<vmem>>, vector<128x512xbf16>
    %cst = arith.constant dense<0.000000e+00> : vector<8x512xf32>
    %2 = tpu.matmul %0, %1, %cst {dimension_numbers = #tpu.dot_dimension_numbers<[1], [0], [0], [1], [0, 0, 1, 1], [], []>} : vector<8x128xbf16>, vector<128x512xbf16>, vector<8x512xf32> -> vector<8x512xf32>
    %3 = arith.truncf %2 : vector<8x512xf32> to vector<8x512xbf16>
    %cst_3 = arith.constant 5.000000e-01 : bf16
    %4 = vector.broadcast %cst_3 : bf16 to vector<8x512xbf16>
    %5 = arith.mulf %3, %4 : vector<8x512xbf16>
    %6 = math.tanh %5 : vector<8x512xbf16>
    %cst_4 = arith.constant 1.000000e+00 : bf16
    %7 = vector.broadcast %cst_4 : bf16 to vector<8x512xbf16>
    %8 = arith.addf %6, %7 : vector<8x512xbf16>
    %cst_5 = arith.constant 5.000000e-01 : bf16
    %9 = vector.broadcast %cst_5 : bf16 to vector<8x512xbf16>
    %10 = arith.mulf %9, %8 : vector<8x512xbf16>
    %11 = arith.mulf %3, %10 : vector<8x512xbf16>
    %c0_6 = arith.constant 0 : index
    %c0_7 = arith.constant 0 : index
    %12 = vector.load %arg3[%c0_6, %c0_7] : memref<512x512xbf16, #tpu.memory_space<vmem>>, vector<512x512xbf16>
    %cst_8 = arith.constant dense<0.000000e+00> : vector<8x512xf32>
    %13 = tpu.matmul %11, %12, %cst_8 {dimension_numbers = #tpu.dot_dimension_numbers<[1], [0], [0], [1], [0, 0, 1, 1], [], []>} : vector<8x512xbf16>, vector<512x512xbf16>, vector<8x512xf32> -> vector<8x512xf32>
    %14 = arith.truncf %13 : vector<8x512xf32> to vector<8x512xbf16>
    %c0_9 = arith.constant 0 : index
    %c0_10 = arith.constant 0 : index
    %15 = vector.load %arg4[%c0_9, %c0_10] : memref<1x512xf32, #tpu.memory_space<vmem>>, vector<1x512xf32>
    %16 = arith.truncf %15 : vector<1x512xf32> to vector<1x512xbf16>
    %17 = vector.broadcast %16 : vector<1x512xbf16> to vector<8x512xbf16>
    %18 = arith.addf %14, %17 : vector<8x512xbf16>
    %cst_11 = arith.constant 5.000000e-01 : bf16
    %19 = vector.broadcast %cst_11 : bf16 to vector<8x512xbf16>
    %20 = arith.mulf %18, %19 : vector<8x512xbf16>
    %21 = math.tanh %20 : vector<8x512xbf16>
    %cst_12 = arith.constant 1.000000e+00 : bf16
    %22 = vector.broadcast %cst_12 : bf16 to vector<8x512xbf16>
    %23 = arith.addf %21, %22 : vector<8x512xbf16>
    %cst_13 = arith.constant 5.000000e-01 : bf16
    %24 = vector.broadcast %cst_13 : bf16 to vector<8x512xbf16>
    %25 = arith.mulf %24, %23 : vector<8x512xbf16>
    %26 = arith.mulf %18, %25 : vector<8x512xbf16>
    %c0_14 = arith.constant 0 : index
    %c0_15 = arith.constant 0 : index
    %27 = vector.load %arg5[%c0_14, %c0_15] : memref<512x512xbf16, #tpu.memory_space<vmem>>, vector<512x512xbf16>
    %cst_16 = arith.constant dense<0.000000e+00> : vector<8x512xf32>
    %28 = tpu.matmul %26, %27, %cst_16 {dimension_numbers = #tpu.dot_dimension_numbers<[1], [0], [0], [1], [0, 0, 1, 1], [], []>} : vector<8x512xbf16>, vector<512x512xbf16>, vector<8x512xf32> -> vector<8x512xf32>
    %29 = arith.truncf %28 : vector<8x512xf32> to vector<8x512xbf16>
    %c0_17 = arith.constant 0 : index
    %c0_18 = arith.constant 0 : index
    %30 = vector.load %arg6[%c0_17, %c0_18] : memref<1x512xf32, #tpu.memory_space<vmem>>, vector<1x512xf32>
    %31 = arith.truncf %30 : vector<1x512xf32> to vector<1x512xbf16>
    %32 = vector.broadcast %31 : vector<1x512xbf16> to vector<8x512xbf16>
    %33 = arith.addf %29, %32 : vector<8x512xbf16>
    %cst_19 = arith.constant 5.000000e-01 : bf16
    %34 = vector.broadcast %cst_19 : bf16 to vector<8x512xbf16>
    %35 = arith.mulf %33, %34 : vector<8x512xbf16>
    %36 = math.tanh %35 : vector<8x512xbf16>
    %cst_20 = arith.constant 1.000000e+00 : bf16
    %37 = vector.broadcast %cst_20 : bf16 to vector<8x512xbf16>
    %38 = arith.addf %36, %37 : vector<8x512xbf16>
    %cst_21 = arith.constant 5.000000e-01 : bf16
    %39 = vector.broadcast %cst_21 : bf16 to vector<8x512xbf16>
    %40 = arith.mulf %39, %38 : vector<8x512xbf16>
    %41 = arith.mulf %33, %40 : vector<8x512xbf16>
    %c0_22 = arith.constant 0 : index
    %c0_23 = arith.constant 0 : index
    %42 = vector.load %arg7[%c0_22, %c0_23] : memref<512x128xbf16, #tpu.memory_space<vmem>>, vector<512x128xbf16>
    %cst_24 = arith.constant dense<0.000000e+00> : vector<8x128xf32>
    %43 = tpu.matmul %41, %42, %cst_24 {dimension_numbers = #tpu.dot_dimension_numbers<[1], [0], [0], [1], [0, 0, 1, 1], [], []>} : vector<8x512xbf16>, vector<512x128xbf16>, vector<8x128xf32> -> vector<8x128xf32>
    %c0_25 = arith.constant 0 : index
    %c0_26 = arith.constant 0 : index
    %44 = vector.load %arg8[%c0_25, %c0_26] : memref<1x128xf32, #tpu.memory_space<vmem>>, vector<1x128xf32>
    %45 = vector.broadcast %44 : vector<1x128xf32> to vector<8x128xf32>
    %46 = arith.addf %43, %45 : vector<8x128xf32>
    %c0_27 = arith.constant 0 : index
    %c0_28 = arith.constant 0 : index
    %47 = vector.load %arg9[%c0_27, %c0_28] : memref<8x128xf32, #tpu.memory_space<vmem>>, vector<8x128xf32>
    tpu.vector_store %arg9[%c0_27, %c0_28], %46 {strides = array<i32>} : memref<8x128xf32, #tpu.memory_space<vmem>>, vector<8x128xf32>,
    return
  }
  func.func @transform_0(%arg0: i32) -> (i32, i32) {
    %c0_i32 = arith.constant 0 : i32
    %c0_i32_0 = arith.constant 0 : i32
    return %arg0, %c0_i32 : i32, i32
  }
  func.func @transform_1(%arg0: i32) -> (i32, i32) {
    %c0_i32 = arith.constant 0 : i32
    %c0_i32_0 = arith.constant 0 : i32
    %c0_i32_1 = arith.constant 0 : i32
    return %c0_i32, %c0_i32_0 : i32, i32
  }
  func.func @transform_2(%arg0: i32) -> (i32, i32) {
    %c0_i32 = arith.constant 0 : i32
    %c0_i32_0 = arith.constant 0 : i32
    %c0_i32_1 = arith.constant 0 : i32
    return %c0_i32, %c0_i32_0 : i32, i32
  }
  func.func @transform_3(%arg0: i32) -> (i32, i32) {
    %c0_i32 = arith.constant 0 : i32
    %c0_i32_0 = arith.constant 0 : i32
    %c0_i32_1 = arith.constant 0 : i32
    return %c0_i32, %c0_i32_0 : i32, i32
  }
  func.func @transform_4(%arg0: i32) -> (i32, i32) {
    %c0_i32 = arith.constant 0 : i32
    %c0_i32_0 = arith.constant 0 : i32
    %c0_i32_1 = arith.constant 0 : i32
    return %c0_i32, %c0_i32_0 : i32, i32
  }
  func.func @transform_5(%arg0: i32) -> (i32, i32) {
    %c0_i32 = arith.constant 0 : i32
    %c0_i32_0 = arith.constant 0 : i32
    %c0_i32_1 = arith.constant 0 : i32
    return %c0_i32, %c0_i32_0 : i32, i32
  }
  func.func @transform_6(%arg0: i32) -> (i32, i32) {
    %c0_i32 = arith.constant 0 : i32
    %c0_i32_0 = arith.constant 0 : i32
    %c0_i32_1 = arith.constant 0 : i32
    return %c0_i32, %c0_i32_0 : i32, i32
  }
  func.func @transform_7(%arg0: i32) -> (i32, i32) {
    %c0_i32 = arith.constant 0 : i32
    %c0_i32_0 = arith.constant 0 : i32
    %c0_i32_1 = arith.constant 0 : i32
    return %c0_i32, %c0_i32_0 : i32, i32
  }
  func.func @transform_8(%arg0: i32) -> (i32, i32) {
    %c0_i32 = arith.constant 0 : i32
    %c0_i32_0 = arith.constant 0 : i32
    return %arg0, %c0_i32 : i32, i32
  }
}

</mosaic_0001>

<llo_original>
// kernel: _mlp_forward_impl.1
$region0: #{_mlp_forward_impl.1}
  #allocation0 [shape = 'u32[]', space=smem, size = 0x4, offset = 0x4, fixed_abs, tag = 'smem constant byte address 0x4 - core index']
  #allocation1 [shape = 'u32[72,128]{1,0:T(1,128)}', space=vmem, size = 0x9000, scoped, tag = 'internal scratch']
  %s0 = inlined_call_operand.vmem [shape: bf16[8,128], index: 0, kind: input, shape index: {}]
  %s1 = inlined_call_operand.hbm [shape: bf16[128,512], index: 1, kind: input, shape index: {}]
  %s2 = inlined_call_operand.hbm [shape: bf16[512,512], index: 2, kind: input, shape index: {}]
  %s3 = inlined_call_operand.vmem [shape: f32[1,512], index: 3, kind: input, shape index: {}]
  %s4 = inlined_call_operand.hbm [shape: bf16[512,512], index: 4, kind: input, shape index: {}]
  %s5 = inlined_call_operand.vmem [shape: f32[1,512], index: 5, kind: input, shape index: {}]
  %s6 = inlined_call_operand.hbm [shape: bf16[512,128], index: 6, kind: input, shape index: {}]
  %s7 = inlined_call_operand.vmem [shape: f32[1,128], index: 7, kind: input, shape index: {}]
  %s8 = inlined_call_operand.hbm [shape: f32[8,128], index: 8, kind: output, shape index: {}]
  %s9 = sld [smem:[#allocation0]]
  $region58: #{_mlp_forward_impl.1} parent=0
    _
  %s11 = ssub.s32 1, %s9
  %s12 = scalar_select 0, %s11, %s9
  $region1: #{_mlp_forward_impl.1} parent=0
    #allocation2 [shape = 'u8[131072]{0}', space=vmem, size = 0x20000, scoped, tag = 'input window, operand 1, single buffered']
    #allocation3 [shape = 's32[1]{0}', space=sflag, size = 0x4, scoped, tag = 'scoped memory for _mlp_forward_impl.1']
    #allocation4 [shape = 's32[1]{0}', space=sflag, size = 0x4, scoped, tag = 'scoped memory for _mlp_forward_impl.1']
    #allocation5 [shape = 'u8[524288]{0}', space=vmem, size = 0x80000, scoped, tag = 'input window, operand 2, single buffered']
    #allocation6 [shape = 's32[1]{0}', space=sflag, size = 0x4, scoped, tag = 'scoped memory for _mlp_forward_impl.1']
    #allocation7 [shape = 'u8[524288]{0}', space=vmem, size = 0x80000, scoped, tag = 'input window, operand 4, single buffered']
    #allocation8 [shape = 'u8[131072]{0}', space=vmem, size = 0x20000, scoped, tag = 'input window, operand 6, single buffered']
    #allocation9 [shape = 's32[1]{0}', space=sflag, size = 0x4, scoped, tag = 'scoped memory for _mlp_forward_impl.1']
    #allocation10 [shape = 'u8[4096]{0}', space=vmem, size = 0x1000, scoped, tag = 'output window, operand 0, single buffered']
    %13 = vsyncpa [#allocation3], 0
    %14 = vsyncpa [#allocation6], 0
    %15 = vsyncpa [#allocation9], 0
    %16 = vsyncpa [#allocation4], 0
    // Predicated region
    $region2: #{_mlp_forward_impl.1} parent=1 // pred_check
      _
    $region3: #{_mlp_forward_impl.1} parent=1 // pred_check_branch
      %18 = sbr.rel (0) target = $region5
    $region4: #{_mlp_forward_impl.1} parent=1 // pred_region
      _
    $region5: #{_mlp_forward_impl.1} parent=1 // pred_fallthru
      _
    // Predicated region
    $region6: #{_mlp_forward_impl.1} parent=1 // pred_check
      _
    $region7: #{_mlp_forward_impl.1} parent=1 // pred_check_branch
      %20 = sbr.rel (0) target = $region9
    $region8: #{_mlp_forward_impl.1} parent=1 // pred_region
      %22 = vsyncadd [#allocation3], 0
      %s23 = sshll.u32 %s1, 4
      %s24 = int_to_ptr.hbm [resolvable:$true] %s23
      %s25 = sshll.u32 [#allocation2], 4
      %s26 = int_to_ptr.vmem [resolvable:$true] %s25
      %31 = dma.hbm_to_vmem [thread:$0]  %s24, 4096, %s26, [#allocation3], 256, 256, 16
    $region9: #{_mlp_forward_impl.1} parent=1 // pred_fallthru
      _
    // Predicated region
    $region10: #{_mlp_forward_impl.1} parent=1 // pred_check
      _
    $region11: #{_mlp_forward_impl.1} parent=1 // pred_check_branch
      %33 = sbr.rel (0) target = $region13
    $region12: #{_mlp_forward_impl.1} parent=1 // pred_region
      %35 = vsyncadd [#allocation6], 0
      %s36 = sshll.u32 %s2, 4
      %s37 = int_to_ptr.hbm [resolvable:$true] %s36
      %s38 = sshll.u32 [#allocation5], 4
      %s39 = int_to_ptr.vmem [resolvable:$true] %s38
      %44 = dma.hbm_to_vmem [thread:$0]  %s37, 16384, %s39, [#allocation6], 256, 256, 16
    $region13: #{_mlp_forward_impl.1} parent=1 // pred_fallthru
      _
    // Predicated region
    $region14: #{_mlp_forward_impl.1} parent=1 // pred_check
      _
    $region15: #{_mlp_forward_impl.1} parent=1 // pred_check_branch
      %46 = sbr.rel (0) target = $region17
    $region16: #{_mlp_forward_impl.1} parent=1 // pred_region
      _
    $region17: #{_mlp_forward_impl.1} parent=1 // pred_fallthru
      _
    // Predicated region
    $region18: #{_mlp_forward_impl.1} parent=1 // pred_check
      _
    $region19: #{_mlp_forward_impl.1} parent=1 // pred_check_branch
      %48 = sbr.rel (0) target = $region21
    $region20: #{_mlp_forward_impl.1} parent=1 // pred_region
      %50 = vsyncadd [#allocation6], 0
      %s51 = sshll.u32 %s4, 4
      %s52 = int_to_ptr.hbm [resolvable:$true] %s51
      %s53 = sshll.u32 [#allocation7], 4
      %s54 = int_to_ptr.vmem [resolvable:$true] %s53
      %59 = dma.hbm_to_vmem [thread:$0]  %s52, 16384, %s54, [#allocation6], 256, 256, 16
    $region21: #{_mlp_forward_impl.1} parent=1 // pred_fallthru
      _
    // Predicated region
    $region22: #{_mlp_forward_impl.1} parent=1 // pred_check
      _
    $region23: #{_mlp_forward_impl.1} parent=1 // pred_check_branch
      %61 = sbr.rel (0) target = $region25
    $region24: #{_mlp_forward_impl.1} parent=1 // pred_region
      _
    $region25: #{_mlp_forward_impl.1} parent=1 // pred_fallthru
      _
    // Predicated region
    $region26: #{_mlp_forward_impl.1} parent=1 // pred_check
      _
    $region27: #{_mlp_forward_impl.1} parent=1 // pred_check_branch
      %63 = sbr.rel (0) target = $region29
    $region28: #{_mlp_forward_impl.1} parent=1 // pred_region
      %65 = vsyncadd [#allocation9], 0
      %s66 = sshll.u32 %s6, 4
      %s67 = int_to_ptr.hbm [resolvable:$true] %s66
      %s68 = sshll.u32 [#allocation8], 4
      %s69 = int_to_ptr.vmem [resolvable:$true] %s68
      %74 = dma.hbm_to_vmem [thread:$0]  %s67, 4096, %s69, [#allocation9], 64, 64, 4
    $region29: #{_mlp_forward_impl.1} parent=1 // pred_fallthru
      _
    // Predicated region
    $region30: #{_mlp_forward_impl.1} parent=1 // pred_check
      _
    $region31: #{_mlp_forward_impl.1} parent=1 // pred_check_branch
      %76 = sbr.rel (0) target = $region33
    $region32: #{_mlp_forward_impl.1} parent=1 // pred_region
      _
    $region33: #{_mlp_forward_impl.1} parent=1 // pred_fallthru
      _
    // Predicated region
    $region34: #{_mlp_forward_impl.1} parent=1 // pred_check
      _
    $region35: #{_mlp_forward_impl.1} parent=1 // pred_check_branch
      %78 = sbr.rel (0) target = $region37
    $region36: #{_mlp_forward_impl.1} parent=1 // pred_region
      %80 = dma.done [#allocation3], 4096
    $region37: #{_mlp_forward_impl.1} parent=1 // pred_fallthru
      _
    // Predicated region
    $region38: #{_mlp_forward_impl.1} parent=1 // pred_check
      _
    $region39: #{_mlp_forward_impl.1} parent=1 // pred_check_branch
      %82 = sbr.rel (0) target = $region41
    $region40: #{_mlp_forward_impl.1} parent=1 // pred_region
      %84 = dma.done [#allocation6], 16384
    $region41: #{_mlp_forward_impl.1} parent=1 // pred_fallthru
      _
    // Predicated region
    $region42: #{_mlp_forward_impl.1} parent=1 // pred_check
      _
    $region43: #{_mlp_forward_impl.1} parent=1 // pred_check_branch
      %86 = sbr.rel (0) target = $region45
    $region44: #{_mlp_forward_impl.1} parent=1 // pred_region
      %88 = dma.done [#allocation6], 16384
    $region45: #{_mlp_forward_impl.1} parent=1 // pred_fallthru
      _
    // Predicated region
    $region46: #{_mlp_forward_impl.1} parent=1 // pred_check
      _
    $region47: #{_mlp_forward_impl.1} parent=1 // pred_check_branch
      %90 = sbr.rel (0) target = $region49
    $region48: #{_mlp_forward_impl.1} parent=1 // pred_region
      %92 = dma.done [#allocation9], 4096
    $region49: #{_mlp_forward_impl.1} parent=1 // pred_fallthru
      _
    %v93 = vld [vmem:[%s0] sm:$0xf]
    %v94 = vld [vmem:[#allocation2] sm:$0xff]
    %v95 = vld [vmem:[#allocation2 + $0x8] sm:$0xff]
    %v96 = vld [vmem:[#allocation2 + $0x10] sm:$0xff]
    %v97 = vld [vmem:[#allocation2 + $0x18] sm:$0xff]
    %v98 = vld [vmem:[#allocation2 + $0x20] sm:$0xff]
    %v99 = vld [vmem:[#allocation2 + $0x28] sm:$0xff]
    %v100 = vld [vmem:[#allocation2 + $0x30] sm:$0xff]
    %v101 = vld [vmem:[#allocation2 + $0x38] sm:$0xff]
    %v102 = vld [vmem:[#allocation2 + $0x40] sm:$0xff]
    %v103 = vld [vmem:[#allocation2 + $0x48] sm:$0xff]
    %v104 = vld [vmem:[#allocation2 + $0x50] sm:$0xff]
    %v105 = vld [vmem:[#allocation2 + $0x58] sm:$0xff]
    %v106 = vld [vmem:[#allocation2 + $0x60] sm:$0xff]
    %v107 = vld [vmem:[#allocation2 + $0x68] sm:$0xff]
    %v108 = vld [vmem:[#allocation2 + $0x70] sm:$0xff]
    %v109 = vld [vmem:[#allocation2 + $0x78] sm:$0xff]
    %v110 = vld [vmem:[#allocation2 + $0x80] sm:$0xff]
    %v111 = vld [vmem:[#allocation2 + $0x88] sm:$0xff]
    %v112 = vld [vmem:[#allocation2 + $0x90] sm:$0xff]
    %v113 = vld [vmem:[#allocation2 + $0x98] sm:$0xff]
    %v114 = vld [vmem:[#allocation2 + $0xa0] sm:$0xff]
    %v115 = vld [vmem:[#allocation2 + $0xa8] sm:$0xff]
    %v116 = vld [vmem:[#allocation2 + $0xb0] sm:$0xff]
    %v117 = vld [vmem:[#allocation2 + $0xb8] sm:$0xff]
    %v118 = vld [vmem:[#allocation2 + $0xc0] sm:$0xff]
    %v119 = vld [vmem:[#allocation2 + $0xc8] sm:$0xff]
    %v120 = vld [vmem:[#allocation2 + $0xd0] sm:$0xff]
    %v121 = vld [vmem:[#allocation2 + $0xd8] sm:$0xff]
    %v122 = vld [vmem:[#allocation2 + $0xe0] sm:$0xff]
    %v123 = vld [vmem:[#allocation2 + $0xe8] sm:$0xff]
    %v124 = vld [vmem:[#allocation2 + $0xf0] sm:$0xff]
    %v125 = vld [vmem:[#allocation2 + $0xf8] sm:$0xff]
    %v158 = vunpack.c.l.b16 %v94
    %v159 = vunpack.c.h.b16 %v94
    %v160 = vunpack.c.l.b16 %v95
    %v161 = vunpack.c.h.b16 %v95
    %v162 = vunpack.c.l.b16 %v96
    %v163 = vunpack.c.h.b16 %v96
    %v164 = vunpack.c.l.b16 %v97
    %v165 = vunpack.c.h.b16 %v97
    %v166 = vunpack.c.l.b16 %v98
    %v167 = vunpack.c.h.b16 %v98
    %v168 = vunpack.c.l.b16 %v99
    %v169 = vunpack.c.h.b16 %v99
    %v170 = vunpack.c.l.b16 %v100
    %v171 = vunpack.c.h.b16 %v100
    %v172 = vunpack.c.l.b16 %v101
    %v173 = vunpack.c.h.b16 %v101
    %v174 = vunpack.c.l.b16 %v102
    %v175 = vunpack.c.h.b16 %v102
    %v176 = vunpack.c.l.b16 %v103
    %v177 = vunpack.c.h.b16 %v103
    %v178 = vunpack.c.l.b16 %v104
    %v179 = vunpack.c.h.b16 %v104
    %v180 = vunpack.c.l.b16 %v105
    %v181 = vunpack.c.h.b16 %v105
    %v182 = vunpack.c.l.b16 %v106
    %v183 = vunpack.c.h.b16 %v106
    %v184 = vunpack.c.l.b16 %v107
    %v185 = vunpack.c.h.b16 %v107
    %v186 = vunpack.c.l.b16 %v108
    %v187 = vunpack.c.h.b16 %v108
    %v188 = vunpack.c.l.b16 %v109
    %v189 = vunpack.c.h.b16 %v109
    %v190 = vunpack.c.l.b16 %v110
    %v191 = vunpack.c.h.b16 %v110
    %v192 = vunpack.c.l.b16 %v111
    %v193 = vunpack.c.h.b16 %v111
    %v194 = vunpack.c.l.b16 %v112
    %v195 = vunpack.c.h.b16 %v112
    %v196 = vunpack.c.l.b16 %v113
    %v197 = vunpack.c.h.b16 %v113
    %v198 = vunpack.c.l.b16 %v114
    %v199 = vunpack.c.h.b16 %v114
    %v200 = vunpack.c.l.b16 %v115
    %v201 = vunpack.c.h.b16 %v115
    %v202 = vunpack.c.l.b16 %v116
    %v203 = vunpack.c.h.b16 %v116
    %v204 = vunpack.c.l.b16 %v117
    %v205 = vunpack.c.h.b16 %v117
    %v206 = vunpack.c.l.b16 %v118
    %v207 = vunpack.c.h.b16 %v118
    %v208 = vunpack.c.l.b16 %v119
    %v209 = vunpack.c.h.b16 %v119
    %v210 = vunpack.c.l.b16 %v120
    %v211 = vunpack.c.h.b16 %v120
    %v212 = vunpack.c.l.b16 %v121
    %v213 = vunpack.c.h.b16 %v121
    %v214 = vunpack.c.l.b16 %v122
    %v215 = vunpack.c.h.b16 %v122
    %v216 = vunpack.c.l.b16 %v123
    %v217 = vunpack.c.h.b16 %v123
    %v218 = vunpack.c.l.b16 %v124
    %v219 = vunpack.c.h.b16 %v124
    %v220 = vunpack.c.l.b16 %v125
    %v221 = vunpack.c.h.b16 %v125
    %v222 = vpack.c.b16 %v162, %v158
    %v223 = vpack.c.b16 %v163, %v159
    %v224 = vpack.c.b16 %v164, %v160
    %v225 = vpack.c.b16 %v165, %v161
    %v226 = vpack.c.b16 %v170, %v166
    %v227 = vpack.c.b16 %v171, %v167
    %v228 = vpack.c.b16 %v172, %v168
    %v229 = vpack.c.b16 %v173, %v169
    %v230 = vpack.c.b16 %v178, %v174
    %v231 = vpack.c.b16 %v179, %v175
    %v232 = vpack.c.b16 %v180, %v176
    %v233 = vpack.c.b16 %v181, %v177
    %v234 = vpack.c.b16 %v186, %v182
    %v235 = vpack.c.b16 %v187, %v183
    %v236 = vpack.c.b16 %v188, %v184
    %v237 = vpack.c.b16 %v189, %v185
    %v238 = vpack.c.b16 %v194, %v190
    %v239 = vpack.c.b16 %v195, %v191
    %v240 = vpack.c.b16 %v196, %v192
    %v241 = vpack.c.b16 %v197, %v193
    %v242 = vpack.c.b16 %v202, %v198
    %v243 = vpack.c.b16 %v203, %v199
    %v244 = vpack.c.b16 %v204, %v200
    %v245 = vpack.c.b16 %v205, %v201
    %v246 = vpack.c.b16 %v210, %v206
    %v247 = vpack.c.b16 %v211, %v207
    %v248 = vpack.c.b16 %v212, %v208
    %v249 = vpack.c.b16 %v213, %v209
    %v250 = vpack.c.b16 %v218, %v214
    %v251 = vpack.c.b16 %v219, %v215
    %v252 = vpack.c.b16 %v220, %v216
    %v253 = vpack.c.b16 %v221, %v217
    %286 = vmatpush.bf16.msra.mxu0 %v250
    %287 = vmatpush.bf16.msra.mxu0 %v246
    %288 = vmatpush.bf16.msra.mxu0 %v242
    %289 = vmatpush.bf16.msra.mxu0 %v238
    %290 = vmatpush.bf16.msra.mxu0 %v234
    %291 = vmatpush.bf16.msra.mxu0 %v230
    %292 = vmatpush.bf16.msra.mxu0 %v226
    %293 = vmatpush.bf16.msra.mxu0 %v222
    %294 = vmatmul.bf16.gmra.mxu0 %v93
    %v295 = vpop.f32.mrf.mxu0
    %v296 = vadd.f32 0.0, %v295
    %v297 = vpop.f32.mrf.mxu0
    %298 = vdwg.mxu0
    %299 = vmatpush.bf16.msra.mxu0 %v251
    %300 = vmatpush.bf16.msra.mxu0 %v247
    %301 = vmatpush.bf16.msra.mxu0 %v243
    %302 = vmatpush.bf16.msra.mxu0 %v239
    %303 = vmatpush.bf16.msra.mxu0 %v235
    %304 = vmatpush.bf16.msra.mxu0 %v231
    %305 = vmatpush.bf16.msra.mxu0 %v227
    %306 = vmatpush.bf16.msra.mxu0 %v223
    %307 = vmatmul.bf16.gmra.mxu0 %v93
    %v308 = vpop.f32.mrf.mxu0
    %v309 = vadd.f32 0.0, %v308
    %v310 = vpop.f32.mrf.mxu0
    %311 = vdwg.mxu0
    %312 = vmatpush.bf16.msra.mxu0 %v252
    %313 = vmatpush.bf16.msra.mxu0 %v248
    %314 = vmatpush.bf16.msra.mxu0 %v244
    %315 = vmatpush.bf16.msra.mxu0 %v240
    %316 = vmatpush.bf16.msra.mxu0 %v236
    %317 = vmatpush.bf16.msra.mxu0 %v232
    %318 = vmatpush.bf16.msra.mxu0 %v228
    %319 = vmatpush.bf16.msra.mxu0 %v224
    %320 = vmatmul.bf16.gmra.mxu0 %v93
    %v321 = vpop.f32.mrf.mxu0
    %v322 = vadd.f32 0.0, %v321
    %v323 = vpop.f32.mrf.mxu0
    %324 = vdwg.mxu0
    %325 = vmatpush.bf16.msra.mxu0 %v253
    %326 = vmatpush.bf16.msra.mxu0 %v249
    %327 = vmatpush.bf16.msra.mxu0 %v245
    %328 = vmatpush.bf16.msra.mxu0 %v241
    %329 = vmatpush.bf16.msra.mxu0 %v237
    %330 = vmatpush.bf16.msra.mxu0 %v233
    %331 = vmatpush.bf16.msra.mxu0 %v229
    %332 = vmatpush.bf16.msra.mxu0 %v225
    %333 = vmatmul.bf16.gmra.mxu0 %v93
    %v334 = vpop.f32.mrf.mxu0
    %v335 = vadd.f32 0.0, %v334
    %v336 = vpop.f32.mrf.mxu0
    %337 = vdwg.mxu0
    %v338 = vpack.c.bf16 %v309, %v296
    %v339 = vpack.c.bf16 %v335, %v322
    %v340 = vunpack.c.l.bf16 %v338
    %v341 = vunpack.c.h.bf16 %v338
    %v342 = vunpack.c.l.bf16 %v339
    %v343 = vunpack.c.h.bf16 %v339
    %v344 = vmul.f32 %v340, 0.5
    %v345 = vmul.f32 %v341, 0.5
    %v346 = vmul.f32 %v342, 0.5
    %v347 = vmul.f32 %v343, 0.5
    %v348 = vpack.c.bf16 %v345, %v344
    %v349 = vpack.c.bf16 %v347, %v346
    %v350 = vunpack.c.l.bf16 %v348
    %v351 = vunpack.c.h.bf16 %v348
    %v352 = vunpack.c.l.bf16 %v349
    %v353 = vunpack.c.h.bf16 %v349
    %v354 = vtanh.pop %v350
    %v355 = vtanh.pop %v351
    %v356 = vtanh.pop %v352
    %v357 = vtanh.pop %v353
    %v358 = vpack.c.bf16 %v355, %v354
    %v359 = vpack.c.bf16 %v357, %v356
    %v360 = vunpack.c.l.bf16 %v358
    %v361 = vunpack.c.h.bf16 %v358
    %v362 = vunpack.c.l.bf16 %v359
    %v363 = vunpack.c.h.bf16 %v359
    %v364 = vadd.f32 %v360, 1.0
    %v365 = vadd.f32 %v361, 1.0
    %v366 = vadd.f32 %v362, 1.0
    %v367 = vadd.f32 %v363, 1.0
    %v368 = vpack.c.bf16 %v365, %v364
    %v369 = vpack.c.bf16 %v367, %v366
    %v370 = vunpack.c.l.bf16 %v368
    %v371 = vunpack.c.h.bf16 %v368
    %v372 = vunpack.c.l.bf16 %v369
    %v373 = vunpack.c.h.bf16 %v369
    %v374 = vmul.f32 %v370, 0.5
    %v375 = vmul.f32 %v371, 0.5
    %v376 = vmul.f32 %v372, 0.5
    %v377 = vmul.f32 %v373, 0.5
    %v378 = vpack.c.bf16 %v375, %v374
    %v379 = vpack.c.bf16 %v377, %v376
    %v380 = vunpack.c.l.bf16 %v378
    %v381 = vunpack.c.h.bf16 %v378
    %v382 = vunpack.c.l.bf16 %v379
    %v383 = vunpack.c.h.bf16 %v379
    %v384 = vmul.f32 %v340, %v380
    %v385 = vmul.f32 %v341, %v381
    %v386 = vmul.f32 %v342, %v382
    %v387 = vmul.f32 %v343, %v383
    %v388 = vpack.c.bf16 %v384, %v384
    %v389 = vpack.c.bf16 %v385, %v385
    %v390 = vpack.c.bf16 %v386, %v386
    %v391 = vpack.c.bf16 %v387, %v387
    %v392 = vld [vmem:[#allocation5] sm:$0xff]
    %v393 = vld [vmem:[#allocation5 + $0x8] sm:$0xff]
    %v394 = vld [vmem:[#allocation5 + $0x10] sm:$0xff]
    %v395 = vld [vmem:[#allocation5 + $0x18] sm:$0xff]
    %v396 = vld [vmem:[#allocation5 + $0x20] sm:$0xff]
    %v397 = vld [vmem:[#allocation5 + $0x28] sm:$0xff]
    %v398 = vld [vmem:[#allocation5 + $0x30] sm:$0xff]
    %v399 = vld [vmem:[#allocation5 + $0x38] sm:$0xff]
    %v400 = vld [vmem:[#allocation5 + $0x40] sm:$0xff]
    %v401 = vld [vmem:[#allocation5 + $0x48] sm:$0xff]
    %v402 = vld [vmem:[#allocation5 + $0x50] sm:$0xff]
    %v403 = vld [vmem:[#allocation5 + $0x58] sm:$0xff]
    %v404 = vld [vmem:[#allocation5 + $0x60] sm:$0xff]
    %v405 = vld [vmem:[#allocation5 + $0x68] sm:$0xff]
    %v406 = vld [vmem:[#allocation5 + $0x70] sm:$0xff]
    %v407 = vld [vmem:[#allocation5 + $0x78] sm:$0xff]
    %v408 = vld [vmem:[#allocation5 + $0x80] sm:$0xff]
    %v409 = vld [vmem:[#allocation5 + $0x88] sm:$0xff]
    %v410 = vld [vmem:[#allocation5 + $0x90] sm:$0xff]
    %v411 = vld [vmem:[#allocation5 + $0x98] sm:$0xff]
    %v412 = vld [vmem:[#allocation5 + $0xa0] sm:$0xff]
    %v413 = vld [vmem:[#allocation5 + $0xa8] sm:$0xff]
    %v414 = vld [vmem:[#allocation5 + $0xb0] sm:$0xff]
    %v415 = vld [vmem:[#allocation5 + $0xb8] sm:$0xff]
    %v416 = vld [vmem:[#allocation5 + $0xc0] sm:$0xff]
    %v417 = vld [vmem:[#allocation5 + $0xc8] sm:$0xff]
    %v418 = vld [vmem:[#allocation5 + $0xd0] sm:$0xff]
    %v419 = vld [vmem:[#allocation5 + $0xd8] sm:$0xff]
    %v420 = vld [vmem:[#allocation5 + $0xe0] sm:$0xff]
    %v421 = vld [vmem:[#allocation5 + $0xe8] sm:$0xff]
    %v422 = vld [vmem:[#allocation5 + $0xf0] sm:$0xff]
    %v423 = vld [vmem:[#allocation5 + $0xf8] sm:$0xff]
    %v424 = vld [vmem:[#allocation5 + $0x100] sm:$0xff]
    %v425 = vld [vmem:[#allocation5 + $0x108] sm:$0xff]
    %v426 = vld [vmem:[#allocation5 + $0x110] sm:$0xff]
    %v427 = vld [vmem:[#allocation5 + $0x118] sm:$0xff]
    %v428 = vld [vmem:[#allocation5 + $0x120] sm:$0xff]
    %v429 = vld [vmem:[#allocation5 + $0x128] sm:$0xff]
    %v430 = vld [vmem:[#allocation5 + $0x130] sm:$0xff]
    %v431 = vld [vmem:[#allocation5 + $0x138] sm:$0xff]
    %v432 = vld [vmem:[#allocation5 + $0x140] sm:$0xff]
    %v433 = vld [vmem:[#allocation5 + $0x148] sm:$0xff]
    %v434 = vld [vmem:[#allocation5 + $0x150] sm:$0xff]
    %v435 = vld [vmem:[#allocation5 + $0x158] sm:$0xff]
    %v436 = vld [vmem:[#allocation5 + $0x160] sm:$0xff]
    %v437 = vld [vmem:[#allocation5 + $0x168] sm:$0xff]
    %v438 = vld [vmem:[#allocation5 + $0x170] sm:$0xff]
    %v439 = vld [vmem:[#allocation5 + $0x178] sm:$0xff]
    %v440 = vld [vmem:[#allocation5 + $0x180] sm:$0xff]
    %v441 = vld [vmem:[#allocation5 + $0x188] sm:$0xff]
    %v442 = vld [vmem:[#allocation5 + $0x190] sm:$0xff]
    %v443 = vld [vmem:[#allocation5 + $0x198] sm:$0xff]
    %v444 = vld [vmem:[#allocation5 + $0x1a0] sm:$0xff]
    %v445 = vld [vmem:[#allocation5 + $0x1a8] sm:$0xff]
    %v446 = vld [vmem:[#allocation5 + $0x1b0] sm:$0xff]
    %v447 = vld [vmem:[#allocation5 + $0x1b8] sm:$0xff]
    %v448 = vld [vmem:[#allocation5 + $0x1c0] sm:$0xff]
    %v449 = vld [vmem:[#allocation5 + $0x1c8] sm:$0xff]
    %v450 = vld [vmem:[#allocation5 + $0x1d0] sm:$0xff]
    %v451 = vld [vmem:[#allocation5 + $0x1d8] sm:$0xff]
    %v452 = vld [vmem:[#allocation5 + $0x1e0] sm:$0xff]
    %v453 = vld [vmem:[#allocation5 + $0x1e8] sm:$0xff]
    %v454 = vld [vmem:[#allocation5 + $0x1f0] sm:$0xff]
    %v455 = vld [vmem:[#allocation5 + $0x1f8] sm:$0xff]
    %v456 = vld [vmem:[#allocation5 + $0x200] sm:$0xff]
    %v457 = vld [vmem:[#allocation5 + $0x208] sm:$0xff]
    %v458 = vld [vmem:[#allocation5 + $0x210] sm:$0xff]
    %v459 = vld [vmem:[#allocation5 + $0x218] sm:$0xff]
    %v460 = vld [vmem:[#allocation5 + $0x220] sm:$0xff]
    %v461 = vld [vmem:[#allocation5 + $0x228] sm:$0xff]
    %v462 = vld [vmem:[#allocation5 + $0x230] sm:$0xff]
    %v463 = vld [vmem:[#allocation5 + $0x238] sm:$0xff]
    %v464 = vld [vmem:[#allocation5 + $0x240] sm:$0xff]
    %v465 = vld [vmem:[#allocation5 + $0x248] sm:$0xff]
    %v466 = vld [vmem:[#allocation5 + $0x250] sm:$0xff]
    %v467 = vld [vmem:[#allocation5 + $0x258] sm:$0xff]
    %v468 = vld [vmem:[#allocation5 + $0x260] sm:$0xff]
    %v469 = vld [vmem:[#allocation5 + $0x268] sm:$0xff]
    %v470 = vld [vmem:[#allocation5 + $0x270] sm:$0xff]
    %v471 = vld [vmem:[#allocation5 + $0x278] sm:$0xff]
    %v472 = vld [vmem:[#allocation5 + $0x280] sm:$0xff]
    %v473 = vld [vmem:[#allocation5 + $0x288] sm:$0xff]
    %v474 = vld [vmem:[#allocation5 + $0x290] sm:$0xff]
    %v475 = vld [vmem:[#allocation5 + $0x298] sm:$0xff]
    %v476 = vld [vmem:[#allocation5 + $0x2a0] sm:$0xff]
    %v477 = vld [vmem:[#allocation5 + $0x2a8] sm:$0xff]
    %v478 = vld [vmem:[#allocation5 + $0x2b0] sm:$0xff]
    %v479 = vld [vmem:[#allocation5 + $0x2b8] sm:$0xff]
    %v480 = vld [vmem:[#allocation5 + $0x2c0] sm:$0xff]
    %v481 = vld [vmem:[#allocation5 + $0x2c8] sm:$0xff]
    %v482 = vld [vmem:[#allocation5 + $0x2d0] sm:$0xff]
    %v483 = vld [vmem:[#allocation5 + $0x2d8] sm:$0xff]
    %v484 = vld [vmem:[#allocation5 + $0x2e0] sm:$0xff]
    %v485 = vld [vmem:[#allocation5 + $0x2e8] sm:$0xff]
    %v486 = vld [vmem:[#allocation5 + $0x2f0] sm:$0xff]
    %v487 = vld [vmem:[#allocation5 + $0x2f8] sm:$0xff]
    %v488 = vld [vmem:[#allocation5 + $0x300] sm:$0xff]
    %v489 = vld [vmem:[#allocation5 + $0x308] sm:$0xff]
    %v490 = vld [vmem:[#allocation5 + $0x310] sm:$0xff]
    %v491 = vld [vmem:[#allocation5 + $0x318] sm:$0xff]
    %v492 = vld [vmem:[#allocation5 + $0x320] sm:$0xff]
    %v493 = vld [vmem:[#allocation5 + $0x328] sm:$0xff]
    %v494 = vld [vmem:[#allocation5 + $0x330] sm:$0xff]
    %v495 = vld [vmem:[#allocation5 + $0x338] sm:$0xff]
    %v496 = vld [vmem:[#allocation5 + $0x340] sm:$0xff]
    %v497 = vld [vmem:[#allocation5 + $0x348] sm:$0xff]
    %v498 = vld [vmem:[#allocation5 + $0x350] sm:$0xff]
    %v499 = vld [vmem:[#allocation5 + $0x358] sm:$0xff]
    %v500 = vld [vmem:[#allocation5 + $0x360] sm:$0xff]
    %v501 = vld [vmem:[#allocation5 + $0x368] sm:$0xff]
    %v502 = vld [vmem:[#allocation5 + $0x370] sm:$0xff]
    %v503 = vld [vmem:[#allocation5 + $0x378] sm:$0xff]
    %v504 = vld [vmem:[#allocation5 + $0x380] sm:$0xff]
    %v505 = vld [vmem:[#allocation5 + $0x388] sm:$0xff]
    %v506 = vld [vmem:[#allocation5 + $0x390] sm:$0xff]
    %v507 = vld [vmem:[#allocation5 + $0x398] sm:$0xff]
    %v508 = vld [vmem:[#allocation5 + $0x3a0] sm:$0xff]
    %v509 = vld [vmem:[#allocation5 + $0x3a8] sm:$0xff]
    %v510 = vld [vmem:[#allocation5 + $0x3b0] sm:$0xff]
    %v511 = vld [vmem:[#allocation5 + $0x3b8] sm:$0xff]
    %v512 = vld [vmem:[#allocation5 + $0x3c0] sm:$0xff]
    %v513 = vld [vmem:[#allocation5 + $0x3c8] sm:$0xff]
    %v514 = vld [vmem:[#allocation5 + $0x3d0] sm:$0xff]
    %v515 = vld [vmem:[#allocation5 + $0x3d8] sm:$0xff]
    %v516 = vld [vmem:[#allocation5 + $0x3e0] sm:$0xff]
    %v517 = vld [vmem:[#allocation5 + $0x3e8] sm:$0xff]
    %v518 = vld [vmem:[#allocation5 + $0x3f0] sm:$0xff]
    %v519 = vld [vmem:[#allocation5 + $0x3f8] sm:$0xff]
    %v648 = vunpack.c.l.b16 %v392
    %v649 = vunpack.c.h.b16 %v392
    %v650 = vunpack.c.l.b16 %v393
    %v651 = vunpack.c.h.b16 %v393
    %v652 = vunpack.c.l.b16 %v394
    %v653 = vunpack.c.h.b16 %v394
    %v654 = vunpack.c.l.b16 %v395
    %v655 = vunpack.c.h.b16 %v395
    %v656 = vunpack.c.l.b16 %v396
    %v657 = vunpack.c.h.b16 %v396
    %v658 = vunpack.c.l.b16 %v397
    %v659 = vunpack.c.h.b16 %v397
    %v660 = vunpack.c.l.b16 %v398
    %v661 = vunpack.c.h.b16 %v398
    %v662 = vunpack.c.l.b16 %v399
    %v663 = vunpack.c.h.b16 %v399
    %v664 = vunpack.c.l.b16 %v400
    %v665 = vunpack.c.h.b16 %v400
    %v666 = vunpack.c.l.b16 %v401
    %v667 = vunpack.c.h.b16 %v401
    %v668 = vunpack.c.l.b16 %v402
    %v669 = vunpack.c.h.b16 %v402
    %v670 = vunpack.c.l.b16 %v403
    %v671 = vunpack.c.h.b16 %v403
    %v672 = vunpack.c.l.b16 %v404
    %v673 = vunpack.c.h.b16 %v404
    %v674 = vunpack.c.l.b16 %v405
    %v675 = vunpack.c.h.b16 %v405
    %v676 = vunpack.c.l.b16 %v406
    %v677 = vunpack.c.h.b16 %v406
    %v678 = vunpack.c.l.b16 %v407
    %v679 = vunpack.c.h.b16 %v407
    %v680 = vunpack.c.l.b16 %v408
    %v681 = vunpack.c.h.b16 %v408
    %v682 = vunpack.c.l.b16 %v409
    %v683 = vunpack.c.h.b16 %v409
    %v684 = vunpack.c.l.b16 %v410
    %v685 = vunpack.c.h.b16 %v410
    %v686 = vunpack.c.l.b16 %v411
    %v687 = vunpack.c.h.b16 %v411
    %v688 = vunpack.c.l.b16 %v412
    %v689 = vunpack.c.h.b16 %v412
    %v690 = vunpack.c.l.b16 %v413
    %v691 = vunpack.c.h.b16 %v413
    %v692 = vunpack.c.l.b16 %v414
    %v693 = vunpack.c.h.b16 %v414
    %v694 = vunpack.c.l.b16 %v415
    %v695 = vunpack.c.h.b16 %v415
    %v696 = vunpack.c.l.b16 %v416
    %v697 = vunpack.c.h.b16 %v416
    %v698 = vunpack.c.l.b16 %v417
    %v699 = vunpack.c.h.b16 %v417
    %v700 = vunpack.c.l.b16 %v418
    %v701 = vunpack.c.h.b16 %v418
    %v702 = vunpack.c.l.b16 %v419
    %v703 = vunpack.c.h.b16 %v419
    %v704 = vunpack.c.l.b16 %v420
    %v705 = vunpack.c.h.b16 %v420
    %v706 = vunpack.c.l.b16 %v421
    %v707 = vunpack.c.h.b16 %v421
    %v708 = vunpack.c.l.b16 %v422
    %v709 = vunpack.c.h.b16 %v422
    %v710 = vunpack.c.l.b16 %v423
    %v711 = vunpack.c.h.b16 %v423
    %v712 = vunpack.c.l.b16 %v424
    %v713 = vunpack.c.h.b16 %v424
    %v714 = vunpack.c.l.b16 %v425
    %v715 = vunpack.c.h.b16 %v425
    %v716 = vunpack.c.l.b16 %v426
    %v717 = vunpack.c.h.b16 %v426
    %v718 = vunpack.c.l.b16 %v427
    %v719 = vunpack.c.h.b16 %v427
    %v720 = vunpack.c.l.b16 %v428
    %v721 = vunpack.c.h.b16 %v428
    %v722 = vunpack.c.l.b16 %v429
    %v723 = vunpack.c.h.b16 %v429
    %v724 = vunpack.c.l.b16 %v430
    %v725 = vunpack.c.h.b16 %v430
    %v726 = vunpack.c.l.b16 %v431
    %v727 = vunpack.c.h.b16 %v431
    %v728 = vunpack.c.l.b16 %v432
    %v729 = vunpack.c.h.b16 %v432
    %v730 = vunpack.c.l.b16 %v433
    %v731 = vunpack.c.h.b16 %v433
    %v732 = vunpack.c.l.b16 %v434
    %v733 = vunpack.c.h.b16 %v434
    %v734 = vunpack.c.l.b16 %v435
    %v735 = vunpack.c.h.b16 %v435
    %v736 = vunpack.c.l.b16 %v436
    %v737 = vunpack.c.h.b16 %v436
    %v738 = vunpack.c.l.b16 %v437
    %v739 = vunpack.c.h.b16 %v437
    %v740 = vunpack.c.l.b16 %v438
    %v741 = vunpack.c.h.b16 %v438
    %v742 = vunpack.c.l.b16 %v439
    %v743 = vunpack.c.h.b16 %v439
    %v744 = vunpack.c.l.b16 %v440
    %v745 = vunpack.c.h.b16 %v440
    %v746 = vunpack.c.l.b16 %v441
    %v747 = vunpack.c.h.b16 %v441
    %v748 = vunpack.c.l.b16 %v442
    %v749 = vunpack.c.h.b16 %v442
    %v750 = vunpack.c.l.b16 %v443
    %v751 = vunpack.c.h.b16 %v443
    %v752 = vunpack.c.l.b16 %v444
    %v753 = vunpack.c.h.b16 %v444
    %v754 = vunpack.c.l.b16 %v445
    %v755 = vunpack.c.h.b16 %v445
    %v756 = vunpack.c.l.b16 %v446
    %v757 = vunpack.c.h.b16 %v446
    %v758 = vunpack.c.l.b16 %v447
    %v759 = vunpack.c.h.b16 %v447
    %v760 = vunpack.c.l.b16 %v448
    %v761 = vunpack.c.h.b16 %v448
    %v762 = vunpack.c.l.b16 %v449
    %v763 = vunpack.c.h.b16 %v449
    %v764 = vunpack.c.l.b16 %v450
    %v765 = vunpack.c.h.b16 %v450
    %v766 = vunpack.c.l.b16 %v451
    %v767 = vunpack.c.h.b16 %v451
    %v768 = vunpack.c.l.b16 %v452
    %v769 = vunpack.c.h.b16 %v452
    %v770 = vunpack.c.l.b16 %v453
    %v771 = vunpack.c.h.b16 %v453
    %v772 = vunpack.c.l.b16 %v454
    %v773 = vunpack.c.h.b16 %v454
    %v774 = vunpack.c.l.b16 %v455
    %v775 = vunpack.c.h.b16 %v455
    %v776 = vunpack.c.l.b16 %v456
    %v777 = vunpack.c.h.b16 %v456
    %v778 = vunpack.c.l.b16 %v457
    %v779 = vunpack.c.h.b16 %v457
    %v780 = vunpack.c.l.b16 %v458
    %v781 = vunpack.c.h.b16 %v458
    %v782 = vunpack.c.l.b16 %v459
    %v783 = vunpack.c.h.b16 %v459
    %v784 = vunpack.c.l.b16 %v460
    %v785 = vunpack.c.h.b16 %v460
    %v786 = vunpack.c.l.b16 %v461
    %v787 = vunpack.c.h.b16 %v461
    %v788 = vunpack.c.l.b16 %v462
    %v789 = vunpack.c.h.b16 %v462
    %v790 = vunpack.c.l.b16 %v463
    %v791 = vunpack.c.h.b16 %v463
    %v792 = vunpack.c.l.b16 %v464
    %v793 = vunpack.c.h.b16 %v464
    %v794 = vunpack.c.l.b16 %v465
    %v795 = vunpack.c.h.b16 %v465
    %v796 = vunpack.c.l.b16 %v466
    %v797 = vunpack.c.h.b16 %v466
    %v798 = vunpack.c.l.b16 %v467
    %v799 = vunpack.c.h.b16 %v467
    %v800 = vunpack.c.l.b16 %v468
    %v801 = vunpack.c.h.b16 %v468
    %v802 = vunpack.c.l.b16 %v469
    %v803 = vunpack.c.h.b16 %v469
    %v804 = vunpack.c.l.b16 %v470
    %v805 = vunpack.c.h.b16 %v470
    %v806 = vunpack.c.l.b16 %v471
    %v807 = vunpack.c.h.b16 %v471
    %v808 = vunpack.c.l.b16 %v472
    %v809 = vunpack.c.h.b16 %v472
    %v810 = vunpack.c.l.b16 %v473
    %v811 = vunpack.c.h.b16 %v473
    %v812 = vunpack.c.l.b16 %v474
    %v813 = vunpack.c.h.b16 %v474
    %v814 = vunpack.c.l.b16 %v475
    %v815 = vunpack.c.h.b16 %v475
    %v816 = vunpack.c.l.b16 %v476
    %v817 = vunpack.c.h.b16 %v476
    %v818 = vunpack.c.l.b16 %v477
    %v819 = vunpack.c.h.b16 %v477
    %v820 = vunpack.c.l.b16 %v478
    %v821 = vunpack.c.h.b16 %v478
    %v822 = vunpack.c.l.b16 %v479
    %v823 = vunpack.c.h.b16 %v479
    %v824 = vunpack.c.l.b16 %v480
    %v825 = vunpack.c.h.b16 %v480
    %v826 = vunpack.c.l.b16 %v481
    %v827 = vunpack.c.h.b16 %v481
    %v828 = vunpack.c.l.b16 %v482
    %v829 = vunpack.c.h.b16 %v482
    %v830 = vunpack.c.l.b16 %v483
    %v831 = vunpack.c.h.b16 %v483
    %v832 = vunpack.c.l.b16 %v484
    %v833 = vunpack.c.h.b16 %v484
    %v834 = vunpack.c.l.b16 %v485
    %v835 = vunpack.c.h.b16 %v485
    %v836 = vunpack.c.l.b16 %v486
    %v837 = vunpack.c.h.b16 %v486
    %v838 = vunpack.c.l.b16 %v487
    %v839 = vunpack.c.h.b16 %v487
    %v840 = vunpack.c.l.b16 %v488
    %v841 = vunpack.c.h.b16 %v488
    %v842 = vunpack.c.l.b16 %v489
    %v843 = vunpack.c.h.b16 %v489
    %v844 = vunpack.c.l.b16 %v490
    %v845 = vunpack.c.h.b16 %v490
    %v846 = vunpack.c.l.b16 %v491
    %v847 = vunpack.c.h.b16 %v491
    %v848 = vunpack.c.l.b16 %v492
    %v849 = vunpack.c.h.b16 %v492
    %v850 = vunpack.c.l.b16 %v493
    %v851 = vunpack.c.h.b16 %v493
    %v852 = vunpack.c.l.b16 %v494
    %v853 = vunpack.c.h.b16 %v494
    %v854 = vunpack.c.l.b16 %v495
    %v855 = vunpack.c.h.b16 %v495
    %v856 = vunpack.c.l.b16 %v496
    %v857 = vunpack.c.h.b16 %v496
    %v858 = vunpack.c.l.b16 %v497
    %v859 = vunpack.c.h.b16 %v497
    %v860 = vunpack.c.l.b16 %v498
    %v861 = vunpack.c.h.b16 %v498
    %v862 = vunpack.c.l.b16 %v499
    %v863 = vunpack.c.h.b16 %v499
    %v864 = vunpack.c.l.b16 %v500
    %v865 = vunpack.c.h.b16 %v500
    %v866 = vunpack.c.l.b16 %v501
    %v867 = vunpack.c.h.b16 %v501
    %v868 = vunpack.c.l.b16 %v502
    %v869 = vunpack.c.h.b16 %v502
    %v870 = vunpack.c.l.b16 %v503
    %v871 = vunpack.c.h.b16 %v503
    %v872 = vunpack.c.l.b16 %v504
    %v873 = vunpack.c.h.b16 %v504
    %v874 = vunpack.c.l.b16 %v505
    %v875 = vunpack.c.h.b16 %v505
    %v876 = vunpack.c.l.b16 %v506
    %v877 = vunpack.c.h.b16 %v506
    %v878 = vunpack.c.l.b16 %v507
    %v879 = vunpack.c.h.b16 %v507
    %v880 = vunpack.c.l.b16 %v508
    %v881 = vunpack.c.h.b16 %v508
    %v882 = vunpack.c.l.b16 %v509
    %v883 = vunpack.c.h.b16 %v509
    %v884 = vunpack.c.l.b16 %v510
    %v885 = vunpack.c.h.b16 %v510
    %v886 = vunpack.c.l.b16 %v511
    %v887 = vunpack.c.h.b16 %v511
    %v888 = vunpack.c.l.b16 %v512
    %v889 = vunpack.c.h.b16 %v512
    %v890 = vunpack.c.l.b16 %v513
    %v891 = vunpack.c.h.b16 %v513
    %v892 = vunpack.c.l.b16 %v514
    %v893 = vunpack.c.h.b16 %v514
    %v894 = vunpack.c.l.b16 %v515
    %v895 = vunpack.c.h.b16 %v515
    %v896 = vunpack.c.l.b16 %v516
    %v897 = vunpack.c.h.b16 %v516
    %v898 = vunpack.c.l.b16 %v517
    %v899 = vunpack.c.h.b16 %v517
    %v900 = vunpack.c.l.b16 %v518
    %v901 = vunpack.c.h.b16 %v518
    %v902 = vunpack.c.l.b16 %v519
    %v903 = vunpack.c.h.b16 %v519
    %v904 = vpack.c.b16 %v652, %v648
    %v905 = vpack.c.b16 %v653, %v649
    %v906 = vpack.c.b16 %v654, %v650
    %v907 = vpack.c.b16 %v655, %v651
    %v908 = vpack.c.b16 %v660, %v656
    %v909 = vpack.c.b16 %v661, %v657
    %v910 = vpack.c.b16 %v662, %v658
    %v911 = vpack.c.b16 %v663, %v659
    %v912 = vpack.c.b16 %v668, %v664
    %v913 = vpack.c.b16 %v669, %v665
    %v914 = vpack.c.b16 %v670, %v666
    %v915 = vpack.c.b16 %v671, %v667
    %v916 = vpack.c.b16 %v676, %v672
    %v917 = vpack.c.b16 %v677, %v673
    %v918 = vpack.c.b16 %v678, %v674
    %v919 = vpack.c.b16 %v679, %v675
    %v920 = vpack.c.b16 %v684, %v680
    %v921 = vpack.c.b16 %v685, %v681
    %v922 = vpack.c.b16 %v686, %v682
    %v923 = vpack.c.b16 %v687, %v683
    %v924 = vpack.c.b16 %v692, %v688
    %v925 = vpack.c.b16 %v693, %v689
    %v926 = vpack.c.b16 %v694, %v690
    %v927 = vpack.c.b16 %v695, %v691
    %v928 = vpack.c.b16 %v700, %v696
    %v929 = vpack.c.b16 %v701, %v697
    %v930 = vpack.c.b16 %v702, %v698
    %v931 = vpack.c.b16 %v703, %v699
    %v932 = vpack.c.b16 %v708, %v704
    %v933 = vpack.c.b16 %v709, %v705
    %v934 = vpack.c.b16 %v710, %v706
    %v935 = vpack.c.b16 %v711, %v707
    %v936 = vpack.c.b16 %v716, %v712
    %v937 = vpack.c.b16 %v717, %v713
    %v938 = vpack.c.b16 %v718, %v714
    %v939 = vpack.c.b16 %v719, %v715
    %v940 = vpack.c.b16 %v724, %v720
    %v941 = vpack.c.b16 %v725, %v721
    %v942 = vpack.c.b16 %v726, %v722
    %v943 = vpack.c.b16 %v727, %v723
    %v944 = vpack.c.b16 %v732, %v728
    %v945 = vpack.c.b16 %v733, %v729
    %v946 = vpack.c.b16 %v734, %v730
    %v947 = vpack.c.b16 %v735, %v731
    %v948 = vpack.c.b16 %v740, %v736
    %v949 = vpack.c.b16 %v741, %v737
    %v950 = vpack.c.b16 %v742, %v738
    %v951 = vpack.c.b16 %v743, %v739
    %v952 = vpack.c.b16 %v748, %v744
    %v953 = vpack.c.b16 %v749, %v745
    %v954 = vpack.c.b16 %v750, %v746
    %v955 = vpack.c.b16 %v751, %v747
    %v956 = vpack.c.b16 %v756, %v752
    %v957 = vpack.c.b16 %v757, %v753
    %v958 = vpack.c.b16 %v758, %v754
    %v959 = vpack.c.b16 %v759, %v755
    %v960 = vpack.c.b16 %v764, %v760
    %v961 = vpack.c.b16 %v765, %v761
    %v962 = vpack.c.b16 %v766, %v762
    %v963 = vpack.c.b16 %v767, %v763
    %v964 = vpack.c.b16 %v772, %v768
    %v965 = vpack.c.b16 %v773, %v769
    %v966 = vpack.c.b16 %v774, %v770
    %v967 = vpack.c.b16 %v775, %v771
    %v968 = vpack.c.b16 %v780, %v776
    %v969 = vpack.c.b16 %v781, %v777
    %v970 = vpack.c.b16 %v782, %v778
    %v971 = vpack.c.b16 %v783, %v779
    %v972 = vpack.c.b16 %v788, %v784
    %v973 = vpack.c.b16 %v789, %v785
    %v974 = vpack.c.b16 %v790, %v786
    %v975 = vpack.c.b16 %v791, %v787
    %v976 = vpack.c.b16 %v796, %v792
    %v977 = vpack.c.b16 %v797, %v793
    %v978 = vpack.c.b16 %v798, %v794
    %v979 = vpack.c.b16 %v799, %v795
    %v980 = vpack.c.b16 %v804, %v800
    %v981 = vpack.c.b16 %v805, %v801
    %v982 = vpack.c.b16 %v806, %v802
    %v983 = vpack.c.b16 %v807, %v803
    %v984 = vpack.c.b16 %v812, %v808
    %v985 = vpack.c.b16 %v813, %v809
    %v986 = vpack.c.b16 %v814, %v810
    %v987 = vpack.c.b16 %v815, %v811
    %v988 = vpack.c.b16 %v820, %v816
    %v989 = vpack.c.b16 %v821, %v817
    %v990 = vpack.c.b16 %v822, %v818
    %v991 = vpack.c.b16 %v823, %v819
    %v992 = vpack.c.b16 %v828, %v824
    %v993 = vpack.c.b16 %v829, %v825
    %v994 = vpack.c.b16 %v830, %v826
    %v995 = vpack.c.b16 %v831, %v827
    %v996 = vpack.c.b16 %v836, %v832
    %v997 = vpack.c.b16 %v837, %v833
    %v998 = vpack.c.b16 %v838, %v834
    %v999 = vpack.c.b16 %v839, %v835
    %v1000 = vpack.c.b16 %v844, %v840
    %v1001 = vpack.c.b16 %v845, %v841
    %v1002 = vpack.c.b16 %v846, %v842
    %v1003 = vpack.c.b16 %v847, %v843
    %v1004 = vpack.c.b16 %v852, %v848
    %v1005 = vpack.c.b16 %v853, %v849
    %v1006 = vpack.c.b16 %v854, %v850
    %v1007 = vpack.c.b16 %v855, %v851
    %v1008 = vpack.c.b16 %v860, %v856
    %v1009 = vpack.c.b16 %v861, %v857
    %v1010 = vpack.c.b16 %v862, %v858
    %v1011 = vpack.c.b16 %v863, %v859
    %v1012 = vpack.c.b16 %v868, %v864
    %v1013 = vpack.c.b16 %v869, %v865
    %v1014 = vpack.c.b16 %v870, %v866
    %v1015 = vpack.c.b16 %v871, %v867
    %v1016 = vpack.c.b16 %v876, %v872
    %v1017 = vpack.c.b16 %v877, %v873
    %v1018 = vpack.c.b16 %v878, %v874
    %v1019 = vpack.c.b16 %v879, %v875
    %v1020 = vpack.c.b16 %v884, %v880
    %v1021 = vpack.c.b16 %v885, %v881
    %v1022 = vpack.c.b16 %v886, %v882
    %v1023 = vpack.c.b16 %v887, %v883
    %v1024 = vpack.c.b16 %v892, %v888
    %v1025 = vpack.c.b16 %v893, %v889
    %v1026 = vpack.c.b16 %v894, %v890
    %v1027 = vpack.c.b16 %v895, %v891
    %v1028 = vpack.c.b16 %v900, %v896
    %v1029 = vpack.c.b16 %v901, %v897
    %v1030 = vpack.c.b16 %v902, %v898
    %v1031 = vpack.c.b16 %v903, %v899
    %1160 = vmatpush.bf16.msra.mxu0 %v932
    %1161 = vmatpush.bf16.msra.mxu0 %v928
    %1162 = vmatpush.bf16.msra.mxu0 %v924
    %1163 = vmatpush.bf16.msra.mxu0 %v920
    %1164 = vmatpush.bf16.msra.mxu0 %v916
    %1165 = vmatpush.bf16.msra.mxu0 %v912
    %1166 = vmatpush.bf16.msra.mxu0 %v908
    %1167 = vmatpush.bf16.msra.mxu0 %v904
    %1168 = vmatmul.bf16.gmra.mxu0 %v388
    %v1169 = vpop.f32.mrf.mxu0
    %v1170 = vadd.f32 0.0, %v1169
    %v1171 = vpop.f32.mrf.mxu0
    %1172 = vdwg.mxu0
    %1173 = vmatpush.bf16.msra.mxu0 %v964
    %1174 = vmatpush.bf16.msra.mxu0 %v960
    %1175 = vmatpush.bf16.msra.mxu0 %v956
    %1176 = vmatpush.bf16.msra.mxu0 %v952
    %1177 = vmatpush.bf16.msra.mxu0 %v948
    %1178 = vmatpush.bf16.msra.mxu0 %v944
    %1179 = vmatpush.bf16.msra.mxu0 %v940
    %1180 = vmatpush.bf16.msra.mxu0 %v936
    %1181 = vmatmul.bf16.gmra.mxu0 %v389
    %v1182 = vpop.f32.mrf.mxu0
    %v1183 = vadd.f32 %v1170, %v1182
    %v1184 = vpop.f32.mrf.mxu0
    %1185 = vdwg.mxu0
    %1186 = vmatpush.bf16.msra.mxu0 %v996
    %1187 = vmatpush.bf16.msra.mxu0 %v992
    %1188 = vmatpush.bf16.msra.mxu0 %v988
    %1189 = vmatpush.bf16.msra.mxu0 %v984
    %1190 = vmatpush.bf16.msra.mxu0 %v980
    %1191 = vmatpush.bf16.msra.mxu0 %v976
    %1192 = vmatpush.bf16.msra.mxu0 %v972
    %1193 = vmatpush.bf16.msra.mxu0 %v968
    %1194 = vmatmul.bf16.gmra.mxu0 %v390
    %v1195 = vpop.f32.mrf.mxu0
    %v1196 = vadd.f32 %v1183, %v1195
    %v1197 = vpop.f32.mrf.mxu0
    %1198 = vdwg.mxu0
    %1199 = vmatpush.bf16.msra.mxu0 %v1028
    %1200 = vmatpush.bf16.msra.mxu0 %v1024
    %1201 = vmatpush.bf16.msra.mxu0 %v1020
    %1202 = vmatpush.bf16.msra.mxu0 %v1016
    %1203 = vmatpush.bf16.msra.mxu0 %v1012
    %1204 = vmatpush.bf16.msra.mxu0 %v1008
    %1205 = vmatpush.bf16.msra.mxu0 %v1004
    %1206 = vmatpush.bf16.msra.mxu0 %v1000
    %1207 = vmatmul.bf16.gmra.mxu0 %v391
    %v1208 = vpop.f32.mrf.mxu0
    %v1209 = vadd.f32 %v1196, %v1208
    %v1210 = vpop.f32.mrf.mxu0
    %1211 = vdwg.mxu0
    %1212 = vmatpush.bf16.msra.mxu0 %v933
    %1213 = vmatpush.bf16.msra.mxu0 %v929
    %1214 = vmatpush.bf16.msra.mxu0 %v925
    %1215 = vmatpush.bf16.msra.mxu0 %v921
    %1216 = vmatpush.bf16.msra.mxu0 %v917
    %1217 = vmatpush.bf16.msra.mxu0 %v913
    %1218 = vmatpush.bf16.msra.mxu0 %v909
    %1219 = vmatpush.bf16.msra.mxu0 %v905
    %1220 = vmatmul.bf16.gmra.mxu0 %v388
    %v1221 = vpop.f32.mrf.mxu0
    %v1222 = vadd.f32 0.0, %v1221
    %v1223 = vpop.f32.mrf.mxu0
    %1224 = vdwg.mxu0
    %1225 = vmatpush.bf16.msra.mxu0 %v965
    %1226 = vmatpush.bf16.msra.mxu0 %v961
    %1227 = vmatpush.bf16.msra.mxu0 %v957
    %1228 = vmatpush.bf16.msra.mxu0 %v953
    %1229 = vmatpush.bf16.msra.mxu0 %v949
    %1230 = vmatpush.bf16.msra.mxu0 %v945
    %1231 = vmatpush.bf16.msra.mxu0 %v941
    %1232 = vmatpush.bf16.msra.mxu0 %v937
    %1233 = vmatmul.bf16.gmra.mxu0 %v389
    %v1234 = vpop.f32.mrf.mxu0
    %v1235 = vadd.f32 %v1222, %v1234
    %v1236 = vpop.f32.mrf.mxu0
    %1237 = vdwg.mxu0
    %1238 = vmatpush.bf16.msra.mxu0 %v997
    %1239 = vmatpush.bf16.msra.mxu0 %v993
    %1240 = vmatpush.bf16.msra.mxu0 %v989
    %1241 = vmatpush.bf16.msra.mxu0 %v985
    %1242 = vmatpush.bf16.msra.mxu0 %v981
    %1243 = vmatpush.bf16.msra.mxu0 %v977
    %1244 = vmatpush.bf16.msra.mxu0 %v973
    %1245 = vmatpush.bf16.msra.mxu0 %v969
    %1246 = vmatmul.bf16.gmra.mxu0 %v390
    %v1247 = vpop.f32.mrf.mxu0
    %v1248 = vadd.f32 %v1235, %v1247
    %v1249 = vpop.f32.mrf.mxu0
    %1250 = vdwg.mxu0
    %1251 = vmatpush.bf16.msra.mxu0 %v1029
    %1252 = vmatpush.bf16.msra.mxu0 %v1025
    %1253 = vmatpush.bf16.msra.mxu0 %v1021
    %1254 = vmatpush.bf16.msra.mxu0 %v1017
    %1255 = vmatpush.bf16.msra.mxu0 %v1013
    %1256 = vmatpush.bf16.msra.mxu0 %v1009
    %1257 = vmatpush.bf16.msra.mxu0 %v1005
    %1258 = vmatpush.bf16.msra.mxu0 %v1001
    %1259 = vmatmul.bf16.gmra.mxu0 %v391
    %v1260 = vpop.f32.mrf.mxu0
    %v1261 = vadd.f32 %v1248, %v1260
    %v1262 = vpop.f32.mrf.mxu0
    %1263 = vdwg.mxu0
    %1264 = vmatpush.bf16.msra.mxu0 %v934
    %1265 = vmatpush.bf16.msra.mxu0 %v930
    %1266 = vmatpush.bf16.msra.mxu0 %v926
    %1267 = vmatpush.bf16.msra.mxu0 %v922
    %1268 = vmatpush.bf16.msra.mxu0 %v918
    %1269 = vmatpush.bf16.msra.mxu0 %v914
    %1270 = vmatpush.bf16.msra.mxu0 %v910
    %1271 = vmatpush.bf16.msra.mxu0 %v906
    %1272 = vmatmul.bf16.gmra.mxu0 %v388
    %v1273 = vpop.f32.mrf.mxu0
    %v1274 = vadd.f32 0.0, %v1273
    %v1275 = vpop.f32.mrf.mxu0
    %1276 = vdwg.mxu0
    %1277 = vmatpush.bf16.msra.mxu0 %v966
    %1278 = vmatpush.bf16.msra.mxu0 %v962
    %1279 = vmatpush.bf16.msra.mxu0 %v958
    %1280 = vmatpush.bf16.msra.mxu0 %v954
    %1281 = vmatpush.bf16.msra.mxu0 %v950
    %1282 = vmatpush.bf16.msra.mxu0 %v946
    %1283 = vmatpush.bf16.msra.mxu0 %v942
    %1284 = vmatpush.bf16.msra.mxu0 %v938
    %1285 = vmatmul.bf16.gmra.mxu0 %v389
    %v1286 = vpop.f32.mrf.mxu0
    %v1287 = vadd.f32 %v1274, %v1286
    %v1288 = vpop.f32.mrf.mxu0
    %1289 = vdwg.mxu0
    %1290 = vmatpush.bf16.msra.mxu0 %v998
    %1291 = vmatpush.bf16.msra.mxu0 %v994
    %1292 = vmatpush.bf16.msra.mxu0 %v990
    %1293 = vmatpush.bf16.msra.mxu0 %v986
    %1294 = vmatpush.bf16.msra.mxu0 %v982
    %1295 = vmatpush.bf16.msra.mxu0 %v978
    %1296 = vmatpush.bf16.msra.mxu0 %v974
    %1297 = vmatpush.bf16.msra.mxu0 %v970
    %1298 = vmatmul.bf16.gmra.mxu0 %v390
    %v1299 = vpop.f32.mrf.mxu0
    %v1300 = vadd.f32 %v1287, %v1299
    %v1301 = vpop.f32.mrf.mxu0
    %1302 = vdwg.mxu0
    %1303 = vmatpush.bf16.msra.mxu0 %v1030
    %1304 = vmatpush.bf16.msra.mxu0 %v1026
    %1305 = vmatpush.bf16.msra.mxu0 %v1022
    %1306 = vmatpush.bf16.msra.mxu0 %v1018
    %1307 = vmatpush.bf16.msra.mxu0 %v1014
    %1308 = vmatpush.bf16.msra.mxu0 %v1010
    %1309 = vmatpush.bf16.msra.mxu0 %v1006
    %1310 = vmatpush.bf16.msra.mxu0 %v1002
    %1311 = vmatmul.bf16.gmra.mxu0 %v391
    %v1312 = vpop.f32.mrf.mxu0
    %v1313 = vadd.f32 %v1300, %v1312
    %v1314 = vpop.f32.mrf.mxu0
    %1315 = vdwg.mxu0
    %1316 = vmatpush.bf16.msra.mxu0 %v935
    %1317 = vmatpush.bf16.msra.mxu0 %v931
    %1318 = vmatpush.bf16.msra.mxu0 %v927
    %1319 = vmatpush.bf16.msra.mxu0 %v923
    %1320 = vmatpush.bf16.msra.mxu0 %v919
    %1321 = vmatpush.bf16.msra.mxu0 %v915
    %1322 = vmatpush.bf16.msra.mxu0 %v911
    %1323 = vmatpush.bf16.msra.mxu0 %v907
    %1324 = vmatmul.bf16.gmra.mxu0 %v388
    %v1325 = vpop.f32.mrf.mxu0
    %v1326 = vadd.f32 0.0, %v1325
    %v1327 = vpop.f32.mrf.mxu0
    %1328 = vdwg.mxu0
    %1329 = vmatpush.bf16.msra.mxu0 %v967
    %1330 = vmatpush.bf16.msra.mxu0 %v963
    %1331 = vmatpush.bf16.msra.mxu0 %v959
    %1332 = vmatpush.bf16.msra.mxu0 %v955
    %1333 = vmatpush.bf16.msra.mxu0 %v951
    %1334 = vmatpush.bf16.msra.mxu0 %v947
    %1335 = vmatpush.bf16.msra.mxu0 %v943
    %1336 = vmatpush.bf16.msra.mxu0 %v939
    %1337 = vmatmul.bf16.gmra.mxu0 %v389
    %v1338 = vpop.f32.mrf.mxu0
    %v1339 = vadd.f32 %v1326, %v1338
    %v1340 = vpop.f32.mrf.mxu0
    %1341 = vdwg.mxu0
    %1342 = vmatpush.bf16.msra.mxu0 %v999
    %1343 = vmatpush.bf16.msra.mxu0 %v995
    %1344 = vmatpush.bf16.msra.mxu0 %v991
    %1345 = vmatpush.bf16.msra.mxu0 %v987
    %1346 = vmatpush.bf16.msra.mxu0 %v983
    %1347 = vmatpush.bf16.msra.mxu0 %v979
    %1348 = vmatpush.bf16.msra.mxu0 %v975
    %1349 = vmatpush.bf16.msra.mxu0 %v971
    %1350 = vmatmul.bf16.gmra.mxu0 %v390
    %v1351 = vpop.f32.mrf.mxu0
    %v1352 = vadd.f32 %v1339, %v1351
    %v1353 = vpop.f32.mrf.mxu0
    %1354 = vdwg.mxu0
    %1355 = vmatpush.bf16.msra.mxu0 %v1031
    %1356 = vmatpush.bf16.msra.mxu0 %v1027
    %1357 = vmatpush.bf16.msra.mxu0 %v1023
    %1358 = vmatpush.bf16.msra.mxu0 %v1019
    %1359 = vmatpush.bf16.msra.mxu0 %v1015
    %1360 = vmatpush.bf16.msra.mxu0 %v1011
    %1361 = vmatpush.bf16.msra.mxu0 %v1007
    %1362 = vmatpush.bf16.msra.mxu0 %v1003
    %1363 = vmatmul.bf16.gmra.mxu0 %v391
    %v1364 = vpop.f32.mrf.mxu0
    %v1365 = vadd.f32 %v1352, %v1364
    %v1366 = vpop.f32.mrf.mxu0
    %1367 = vdwg.mxu0
    %v1368 = vpack.c.bf16 %v1261, %v1209
    %v1369 = vpack.c.bf16 %v1365, %v1313
    %v1370 = vld [vmem:[%s3] sm:$0xf]
    %v1372 = vperm.slane %v1370, 0
    %v1373 = vperm.slane %v1370, 1
    %v1374 = vperm.slane %v1370, 2
    %v1375 = vperm.slane %v1370, 3
    %v1380 = vpack.c.bf16 %v1373, %v1372
    %v1381 = vpack.c.bf16 %v1375, %v1374
    %v1384 = vunpack.c.l.b16 %v1380
    %v1385 = vunpack.c.h.b16 %v1380
    %v1386 = vunpack.c.l.b16 %v1381
    %v1387 = vunpack.c.h.b16 %v1381
    %v1388 = vpack.c.b16 %v1384, %v1384
    %v1389 = vpack.c.b16 %v1385, %v1385
    %v1390 = vpack.c.b16 %v1386, %v1386
    %v1391 = vpack.c.b16 %v1387, %v1387
    %v1393 = vpack.i.b16 %v1388, %v1388
    %v1395 = vperm.slane %v1393, 0
    %v1397 = vpack.i.b16 %v1389, %v1389
    %v1399 = vperm.slane %v1397, 0
    %v1401 = vpack.i.b16 %v1390, %v1390
    %v1403 = vperm.slane %v1401, 0
    %v1405 = vpack.i.b16 %v1391, %v1391
    %v1407 = vperm.slane %v1405, 0
    %v1408 = vunpack.c.l.bf16 %v1368
    %v1409 = vunpack.c.h.bf16 %v1368
    %v1410 = vunpack.c.l.bf16 %v1369
    %v1411 = vunpack.c.h.bf16 %v1369
    %v1412 = vunpack.c.l.bf16 %v1395
    %v1413 = vunpack.c.l.bf16 %v1399
    %v1414 = vunpack.c.l.bf16 %v1403
    %v1415 = vunpack.c.l.bf16 %v1407
    %v1416 = vadd.f32 %v1408, %v1412
    %v1417 = vadd.f32 %v1409, %v1413
    %v1418 = vadd.f32 %v1410, %v1414
    %v1419 = vadd.f32 %v1411, %v1415
    %v1420 = vpack.c.bf16 %v1417, %v1416
    %v1421 = vpack.c.bf16 %v1419, %v1418
    %v1422 = vunpack.c.l.bf16 %v1420
    %v1423 = vunpack.c.h.bf16 %v1420
    %v1424 = vunpack.c.l.bf16 %v1421
    %v1425 = vunpack.c.h.bf16 %v1421
    %v1426 = vmul.f32 %v1422, 0.5
    %v1427 = vmul.f32 %v1423, 0.5
    %v1428 = vmul.f32 %v1424, 0.5
    %v1429 = vmul.f32 %v1425, 0.5
    %v1430 = vpack.c.bf16 %v1427, %v1426
    %v1431 = vpack.c.bf16 %v1429, %v1428
    %v1432 = vunpack.c.l.bf16 %v1430
    %v1433 = vunpack.c.h.bf16 %v1430
    %v1434 = vunpack.c.l.bf16 %v1431
    %v1435 = vunpack.c.h.bf16 %v1431
    %v1436 = vtanh.pop %v1432
    %v1437 = vtanh.pop %v1433
    %v1438 = vtanh.pop %v1434
    %v1439 = vtanh.pop %v1435
    %v1440 = vpack.c.bf16 %v1437, %v1436
    %v1441 = vpack.c.bf16 %v1439, %v1438
    %v1442 = vunpack.c.l.bf16 %v1440
    %v1443 = vunpack.c.h.bf16 %v1440
    %v1444 = vunpack.c.l.bf16 %v1441
    %v1445 = vunpack.c.h.bf16 %v1441
    %v1446 = vadd.f32 %v1442, 1.0
    %v1447 = vadd.f32 %v1443, 1.0
    %v1448 = vadd.f32 %v1444, 1.0
    %v1449 = vadd.f32 %v1445, 1.0
    %v1450 = vpack.c.bf16 %v1447, %v1446
    %v1451 = vpack.c.bf16 %v1449, %v1448
    %v1452 = vunpack.c.l.bf16 %v1450
    %v1453 = vunpack.c.h.bf16 %v1450
    %v1454 = vunpack.c.l.bf16 %v1451
    %v1455 = vunpack.c.h.bf16 %v1451
    %v1456 = vmul.f32 %v1452, 0.5
    %v1457 = vmul.f32 %v1453, 0.5
    %v1458 = vmul.f32 %v1454, 0.5
    %v1459 = vmul.f32 %v1455, 0.5
    %v1460 = vpack.c.bf16 %v1457, %v1456
    %v1461 = vpack.c.bf16 %v1459, %v1458
    %v1462 = vunpack.c.l.bf16 %v1460
    %v1463 = vunpack.c.h.bf16 %v1460
    %v1464 = vunpack.c.l.bf16 %v1461
    %v1465 = vunpack.c.h.bf16 %v1461
    %v1466 = vmul.f32 %v1422, %v1462
    %v1467 = vmul.f32 %v1423, %v1463
    %v1468 = vmul.f32 %v1424, %v1464
    %v1469 = vmul.f32 %v1425, %v1465
    %v1470 = vpack.c.bf16 %v1466, %v1466
    %v1471 = vpack.c.bf16 %v1467, %v1467
    %v1472 = vpack.c.bf16 %v1468, %v1468
    %v1473 = vpack.c.bf16 %v1469, %v1469
    %v1474 = vld [vmem:[#allocation7] sm:$0xff]
    %v1475 = vld [vmem:[#allocation7 + $0x8] sm:$0xff]
    %v1476 = vld [vmem:[#allocation7 + $0x10] sm:$0xff]
    %v1477 = vld [vmem:[#allocation7 + $0x18] sm:$0xff]
    %v1478 = vld [vmem:[#allocation7 + $0x20] sm:$0xff]
    %v1479 = vld [vmem:[#allocation7 + $0x28] sm:$0xff]
    %v1480 = vld [vmem:[#allocation7 + $0x30] sm:$0xff]
    %v1481 = vld [vmem:[#allocation7 + $0x38] sm:$0xff]
    %v1482 = vld [vmem:[#allocation7 + $0x40] sm:$0xff]
    %v1483 = vld [vmem:[#allocation7 + $0x48] sm:$0xff]
    %v1484 = vld [vmem:[#allocation7 + $0x50] sm:$0xff]
    %v1485 = vld [vmem:[#allocation7 + $0x58] sm:$0xff]
    %v1486 = vld [vmem:[#allocation7 + $0x60] sm:$0xff]
    %v1487 = vld [vmem:[#allocation7 + $0x68] sm:$0xff]
    %v1488 = vld [vmem:[#allocation7 + $0x70] sm:$0xff]
    %v1489 = vld [vmem:[#allocation7 + $0x78] sm:$0xff]
    %v1490 = vld [vmem:[#allocation7 + $0x80] sm:$0xff]
    %v1491 = vld [vmem:[#allocation7 + $0x88] sm:$0xff]
    %v1492 = vld [vmem:[#allocation7 + $0x90] sm:$0xff]
    %v1493 = vld [vmem:[#allocation7 + $0x98] sm:$0xff]
    %v1494 = vld [vmem:[#allocation7 + $0xa0] sm:$0xff]
    %v1495 = vld [vmem:[#allocation7 + $0xa8] sm:$0xff]
    %v1496 = vld [vmem:[#allocation7 + $0xb0] sm:$0xff]
    %v1497 = vld [vmem:[#allocation7 + $0xb8] sm:$0xff]
    %v1498 = vld [vmem:[#allocation7 + $0xc0] sm:$0xff]
    %v1499 = vld [vmem:[#allocation7 + $0xc8] sm:$0xff]
    %v1500 = vld [vmem:[#allocation7 + $0xd0] sm:$0xff]
    %v1501 = vld [vmem:[#allocation7 + $0xd8] sm:$0xff]
    %v1502 = vld [vmem:[#allocation7 + $0xe0] sm:$0xff]
    %v1503 = vld [vmem:[#allocation7 + $0xe8] sm:$0xff]
    %v1504 = vld [vmem:[#allocation7 + $0xf0] sm:$0xff]
    %v1505 = vld [vmem:[#allocation7 + $0xf8] sm:$0xff]
    %v1506 = vld [vmem:[#allocation7 + $0x100] sm:$0xff]
    %v1507 = vld [vmem:[#allocation7 + $0x108] sm:$0xff]
    %v1508 = vld [vmem:[#allocation7 + $0x110] sm:$0xff]
    %v1509 = vld [vmem:[#allocation7 + $0x118] sm:$0xff]
    %v1510 = vld [vmem:[#allocation7 + $0x120] sm:$0xff]
    %v1511 = vld [vmem:[#allocation7 + $0x128] sm:$0xff]
    %v1512 = vld [vmem:[#allocation7 + $0x130] sm:$0xff]
    %v1513 = vld [vmem:[#allocation7 + $0x138] sm:$0xff]
    %v1514 = vld [vmem:[#allocation7 + $0x140] sm:$0xff]
    %v1515 = vld [vmem:[#allocation7 + $0x148] sm:$0xff]
    %v1516 = vld [vmem:[#allocation7 + $0x150] sm:$0xff]
    %v1517 = vld [vmem:[#allocation7 + $0x158] sm:$0xff]
    %v1518 = vld [vmem:[#allocation7 + $0x160] sm:$0xff]
    %v1519 = vld [vmem:[#allocation7 + $0x168] sm:$0xff]
    %v1520 = vld [vmem:[#allocation7 + $0x170] sm:$0xff]
    %v1521 = vld [vmem:[#allocation7 + $0x178] sm:$0xff]
    %v1522 = vld [vmem:[#allocation7 + $0x180] sm:$0xff]
    %v1523 = vld [vmem:[#allocation7 + $0x188] sm:$0xff]
    %v1524 = vld [vmem:[#allocation7 + $0x190] sm:$0xff]
    %v1525 = vld [vmem:[#allocation7 + $0x198] sm:$0xff]
    %v1526 = vld [vmem:[#allocation7 + $0x1a0] sm:$0xff]
    %v1527 = vld [vmem:[#allocation7 + $0x1a8] sm:$0xff]
    %v1528 = vld [vmem:[#allocation7 + $0x1b0] sm:$0xff]
    %v1529 = vld [vmem:[#allocation7 + $0x1b8] sm:$0xff]
    %v1530 = vld [vmem:[#allocation7 + $0x1c0] sm:$0xff]
    %v1531 = vld [vmem:[#allocation7 + $0x1c8] sm:$0xff]
    %v1532 = vld [vmem:[#allocation7 + $0x1d0] sm:$0xff]
    %v1533 = vld [vmem:[#allocation7 + $0x1d8] sm:$0xff]
    %v1534 = vld [vmem:[#allocation7 + $0x1e0] sm:$0xff]
    %v1535 = vld [vmem:[#allocation7 + $0x1e8] sm:$0xff]
    %v1536 = vld [vmem:[#allocation7 + $0x1f0] sm:$0xff]
    %v1537 = vld [vmem:[#allocation7 + $0x1f8] sm:$0xff]
    %v1538 = vld [vmem:[#allocation7 + $0x200] sm:$0xff]
    %v1539 = vld [vmem:[#allocation7 + $0x208] sm:$0xff]
    %v1540 = vld [vmem:[#allocation7 + $0x210] sm:$0xff]
    %v1541 = vld [vmem:[#allocation7 + $0x218] sm:$0xff]
    %v1542 = vld [vmem:[#allocation7 + $0x220] sm:$0xff]
    %v1543 = vld [vmem:[#allocation7 + $0x228] sm:$0xff]
    %v1544 = vld [vmem:[#allocation7 + $0x230] sm:$0xff]
    %v1545 = vld [vmem:[#allocation7 + $0x238] sm:$0xff]
    %v1546 = vld [vmem:[#allocation7 + $0x240] sm:$0xff]
    %v1547 = vld [vmem:[#allocation7 + $0x248] sm:$0xff]
    %v1548 = vld [vmem:[#allocation7 + $0x250] sm:$0xff]
    %v1549 = vld [vmem:[#allocation7 + $0x258] sm:$0xff]
    %v1550 = vld [vmem:[#allocation7 + $0x260] sm:$0xff]
    %v1551 = vld [vmem:[#allocation7 + $0x268] sm:$0xff]
    %v1552 = vld [vmem:[#allocation7 + $0x270] sm:$0xff]
    %v1553 = vld [vmem:[#allocation7 + $0x278] sm:$0xff]
    %v1554 = vld [vmem:[#allocation7 + $0x280] sm:$0xff]
    %v1555 = vld [vmem:[#allocation7 + $0x288] sm:$0xff]
    %v1556 = vld [vmem:[#allocation7 + $0x290] sm:$0xff]
    %v1557 = vld [vmem:[#allocation7 + $0x298] sm:$0xff]
    %v1558 = vld [vmem:[#allocation7 + $0x2a0] sm:$0xff]
    %v1559 = vld [vmem:[#allocation7 + $0x2a8] sm:$0xff]
    %v1560 = vld [vmem:[#allocation7 + $0x2b0] sm:$0xff]
    %v1561 = vld [vmem:[#allocation7 + $0x2b8] sm:$0xff]
    %v1562 = vld [vmem:[#allocation7 + $0x2c0] sm:$0xff]
    %v1563 = vld [vmem:[#allocation7 + $0x2c8] sm:$0xff]
    %v1564 = vld [vmem:[#allocation7 + $0x2d0] sm:$0xff]
    %v1565 = vld [vmem:[#allocation7 + $0x2d8] sm:$0xff]
    %v1566 = vld [vmem:[#allocation7 + $0x2e0] sm:$0xff]
    %v1567 = vld [vmem:[#allocation7 + $0x2e8] sm:$0xff]
    %v1568 = vld [vmem:[#allocation7 + $0x2f0] sm:$0xff]
    %v1569 = vld [vmem:[#allocation7 + $0x2f8] sm:$0xff]
    %v1570 = vld [vmem:[#allocation7 + $0x300] sm:$0xff]
    %v1571 = vld [vmem:[#allocation7 + $0x308] sm:$0xff]
    %v1572 = vld [vmem:[#allocation7 + $0x310] sm:$0xff]
    %v1573 = vld [vmem:[#allocation7 + $0x318] sm:$0xff]
    %v1574 = vld [vmem:[#allocation7 + $0x320] sm:$0xff]
    %v1575 = vld [vmem:[#allocation7 + $0x328] sm:$0xff]
    %v1576 = vld [vmem:[#allocation7 + $0x330] sm:$0xff]
    %v1577 = vld [vmem:[#allocation7 + $0x338] sm:$0xff]
    %v1578 = vld [vmem:[#allocation7 + $0x340] sm:$0xff]
    %v1579 = vld [vmem:[#allocation7 + $0x348] sm:$0xff]
    %v1580 = vld [vmem:[#allocation7 + $0x350] sm:$0xff]
    %v1581 = vld [vmem:[#allocation7 + $0x358] sm:$0xff]
    %v1582 = vld [vmem:[#allocation7 + $0x360] sm:$0xff]
    %v1583 = vld [vmem:[#allocation7 + $0x368] sm:$0xff]
    %v1584 = vld [vmem:[#allocation7 + $0x370] sm:$0xff]
    %v1585 = vld [vmem:[#allocation7 + $0x378] sm:$0xff]
    %v1586 = vld [vmem:[#allocation7 + $0x380] sm:$0xff]
    %v1587 = vld [vmem:[#allocation7 + $0x388] sm:$0xff]
    %v1588 = vld [vmem:[#allocation7 + $0x390] sm:$0xff]
    %v1589 = vld [vmem:[#allocation7 + $0x398] sm:$0xff]
    %v1590 = vld [vmem:[#allocation7 + $0x3a0] sm:$0xff]
    %v1591 = vld [vmem:[#allocation7 + $0x3a8] sm:$0xff]
    %v1592 = vld [vmem:[#allocation7 + $0x3b0] sm:$0xff]
    %v1593 = vld [vmem:[#allocation7 + $0x3b8] sm:$0xff]
    %v1594 = vld [vmem:[#allocation7 + $0x3c0] sm:$0xff]
    %v1595 = vld [vmem:[#allocation7 + $0x3c8] sm:$0xff]
    %v1596 = vld [vmem:[#allocation7 + $0x3d0] sm:$0xff]
    %v1597 = vld [vmem:[#allocation7 + $0x3d8] sm:$0xff]
    %v1598 = vld [vmem:[#allocation7 + $0x3e0] sm:$0xff]
    %v1599 = vld [vmem:[#allocation7 + $0x3e8] sm:$0xff]
    %v1600 = vld [vmem:[#allocation7 + $0x3f0] sm:$0xff]
    %v1601 = vld [vmem:[#allocation7 + $0x3f8] sm:$0xff]
    %v1730 = vunpack.c.l.b16 %v1474
    %v1731 = vunpack.c.h.b16 %v1474
    %v1732 = vunpack.c.l.b16 %v1475
    %v1733 = vunpack.c.h.b16 %v1475
    %v1734 = vunpack.c.l.b16 %v1476
    %v1735 = vunpack.c.h.b16 %v1476
    %v1736 = vunpack.c.l.b16 %v1477
    %v1737 = vunpack.c.h.b16 %v1477
    %v1738 = vunpack.c.l.b16 %v1478
    %v1739 = vunpack.c.h.b16 %v1478
    %v1740 = vunpack.c.l.b16 %v1479
    %v1741 = vunpack.c.h.b16 %v1479
    %v1742 = vunpack.c.l.b16 %v1480
    %v1743 = vunpack.c.h.b16 %v1480
    %v1744 = vunpack.c.l.b16 %v1481
    %v1745 = vunpack.c.h.b16 %v1481
    %v1746 = vunpack.c.l.b16 %v1482
    %v1747 = vunpack.c.h.b16 %v1482
    %v1748 = vunpack.c.l.b16 %v1483
    %v1749 = vunpack.c.h.b16 %v1483
    %v1750 = vunpack.c.l.b16 %v1484
    %v1751 = vunpack.c.h.b16 %v1484
    %v1752 = vunpack.c.l.b16 %v1485
    %v1753 = vunpack.c.h.b16 %v1485
    %v1754 = vunpack.c.l.b16 %v1486
    %v1755 = vunpack.c.h.b16 %v1486
    %v1756 = vunpack.c.l.b16 %v1487
    %v1757 = vunpack.c.h.b16 %v1487
    %v1758 = vunpack.c.l.b16 %v1488
    %v1759 = vunpack.c.h.b16 %v1488
    %v1760 = vunpack.c.l.b16 %v1489
    %v1761 = vunpack.c.h.b16 %v1489
    %v1762 = vunpack.c.l.b16 %v1490
    %v1763 = vunpack.c.h.b16 %v1490
    %v1764 = vunpack.c.l.b16 %v1491
    %v1765 = vunpack.c.h.b16 %v1491
    %v1766 = vunpack.c.l.b16 %v1492
    %v1767 = vunpack.c.h.b16 %v1492
    %v1768 = vunpack.c.l.b16 %v1493
    %v1769 = vunpack.c.h.b16 %v1493
    %v1770 = vunpack.c.l.b16 %v1494
    %v1771 = vunpack.c.h.b16 %v1494
    %v1772 = vunpack.c.l.b16 %v1495
    %v1773 = vunpack.c.h.b16 %v1495
    %v1774 = vunpack.c.l.b16 %v1496
    %v1775 = vunpack.c.h.b16 %v1496
    %v1776 = vunpack.c.l.b16 %v1497
    %v1777 = vunpack.c.h.b16 %v1497
    %v1778 = vunpack.c.l.b16 %v1498
    %v1779 = vunpack.c.h.b16 %v1498
    %v1780 = vunpack.c.l.b16 %v1499
    %v1781 = vunpack.c.h.b16 %v1499
    %v1782 = vunpack.c.l.b16 %v1500
    %v1783 = vunpack.c.h.b16 %v1500
    %v1784 = vunpack.c.l.b16 %v1501
    %v1785 = vunpack.c.h.b16 %v1501
    %v1786 = vunpack.c.l.b16 %v1502
    %v1787 = vunpack.c.h.b16 %v1502
    %v1788 = vunpack.c.l.b16 %v1503
    %v1789 = vunpack.c.h.b16 %v1503
    %v1790 = vunpack.c.l.b16 %v1504
    %v1791 = vunpack.c.h.b16 %v1504
    %v1792 = vunpack.c.l.b16 %v1505
    %v1793 = vunpack.c.h.b16 %v1505
    %v1794 = vunpack.c.l.b16 %v1506
    %v1795 = vunpack.c.h.b16 %v1506
    %v1796 = vunpack.c.l.b16 %v1507
    %v1797 = vunpack.c.h.b16 %v1507
    %v1798 = vunpack.c.l.b16 %v1508
    %v1799 = vunpack.c.h.b16 %v1508
    %v1800 = vunpack.c.l.b16 %v1509
    %v1801 = vunpack.c.h.b16 %v1509
    %v1802 = vunpack.c.l.b16 %v1510
    %v1803 = vunpack.c.h.b16 %v1510
    %v1804 = vunpack.c.l.b16 %v1511
    %v1805 = vunpack.c.h.b16 %v1511
    %v1806 = vunpack.c.l.b16 %v1512
    %v1807 = vunpack.c.h.b16 %v1512
    %v1808 = vunpack.c.l.b16 %v1513
    %v1809 = vunpack.c.h.b16 %v1513
    %v1810 = vunpack.c.l.b16 %v1514
    %v1811 = vunpack.c.h.b16 %v1514
    %v1812 = vunpack.c.l.b16 %v1515
    %v1813 = vunpack.c.h.b16 %v1515
    %v1814 = vunpack.c.l.b16 %v1516
    %v1815 = vunpack.c.h.b16 %v1516
    %v1816 = vunpack.c.l.b16 %v1517
    %v1817 = vunpack.c.h.b16 %v1517
    %v1818 = vunpack.c.l.b16 %v1518
    %v1819 = vunpack.c.h.b16 %v1518
    %v1820 = vunpack.c.l.b16 %v1519
    %v1821 = vunpack.c.h.b16 %v1519
    %v1822 = vunpack.c.l.b16 %v1520
    %v1823 = vunpack.c.h.b16 %v1520
    %v1824 = vunpack.c.l.b16 %v1521
    %v1825 = vunpack.c.h.b16 %v1521
    %v1826 = vunpack.c.l.b16 %v1522
    %v1827 = vunpack.c.h.b16 %v1522
    %v1828 = vunpack.c.l.b16 %v1523
    %v1829 = vunpack.c.h.b16 %v1523
    %v1830 = vunpack.c.l.b16 %v1524
    %v1831 = vunpack.c.h.b16 %v1524
    %v1832 = vunpack.c.l.b16 %v1525
    %v1833 = vunpack.c.h.b16 %v1525
    %v1834 = vunpack.c.l.b16 %v1526
    %v1835 = vunpack.c.h.b16 %v1526
    %v1836 = vunpack.c.l.b16 %v1527
    %v1837 = vunpack.c.h.b16 %v1527
    %v1838 = vunpack.c.l.b16 %v1528
    %v1839 = vunpack.c.h.b16 %v1528
    %v1840 = vunpack.c.l.b16 %v1529
    %v1841 = vunpack.c.h.b16 %v1529
    %v1842 = vunpack.c.l.b16 %v1530
    %v1843 = vunpack.c.h.b16 %v1530
    %v1844 = vunpack.c.l.b16 %v1531
    %v1845 = vunpack.c.h.b16 %v1531
    %v1846 = vunpack.c.l.b16 %v1532
    %v1847 = vunpack.c.h.b16 %v1532
    %v1848 = vunpack.c.l.b16 %v1533
    %v1849 = vunpack.c.h.b16 %v1533
    %v1850 = vunpack.c.l.b16 %v1534
    %v1851 = vunpack.c.h.b16 %v1534
    %v1852 = vunpack.c.l.b16 %v1535
    %v1853 = vunpack.c.h.b16 %v1535
    %v1854 = vunpack.c.l.b16 %v1536
    %v1855 = vunpack.c.h.b16 %v1536
    %v1856 = vunpack.c.l.b16 %v1537
    %v1857 = vunpack.c.h.b16 %v1537
    %v1858 = vunpack.c.l.b16 %v1538
    %v1859 = vunpack.c.h.b16 %v1538
    %v1860 = vunpack.c.l.b16 %v1539
    %v1861 = vunpack.c.h.b16 %v1539
    %v1862 = vunpack.c.l.b16 %v1540
    %v1863 = vunpack.c.h.b16 %v1540
    %v1864 = vunpack.c.l.b16 %v1541
    %v1865 = vunpack.c.h.b16 %v1541
    %v1866 = vunpack.c.l.b16 %v1542
    %v1867 = vunpack.c.h.b16 %v1542
    %v1868 = vunpack.c.l.b16 %v1543
    %v1869 = vunpack.c.h.b16 %v1543
    %v1870 = vunpack.c.l.b16 %v1544
    %v1871 = vunpack.c.h.b16 %v1544
    %v1872 = vunpack.c.l.b16 %v1545
    %v1873 = vunpack.c.h.b16 %v1545
    %v1874 = vunpack.c.l.b16 %v1546
    %v1875 = vunpack.c.h.b16 %v1546
    %v1876 = vunpack.c.l.b16 %v1547
    %v1877 = vunpack.c.h.b16 %v1547
    %v1878 = vunpack.c.l.b16 %v1548
    %v1879 = vunpack.c.h.b16 %v1548
    %v1880 = vunpack.c.l.b16 %v1549
    %v1881 = vunpack.c.h.b16 %v1549
    %v1882 = vunpack.c.l.b16 %v1550
    %v1883 = vunpack.c.h.b16 %v1550
    %v1884 = vunpack.c.l.b16 %v1551
    %v1885 = vunpack.c.h.b16 %v1551
    %v1886 = vunpack.c.l.b16 %v1552
    %v1887 = vunpack.c.h.b16 %v1552
    %v1888 = vunpack.c.l.b16 %v1553
    %v1889 = vunpack.c.h.b16 %v1553
    %v1890 = vunpack.c.l.b16 %v1554
    %v1891 = vunpack.c.h.b16 %v1554
    %v1892 = vunpack.c.l.b16 %v1555
    %v1893 = vunpack.c.h.b16 %v1555
    %v1894 = vunpack.c.l.b16 %v1556
    %v1895 = vunpack.c.h.b16 %v1556
    %v1896 = vunpack.c.l.b16 %v1557
    %v1897 = vunpack.c.h.b16 %v1557
    %v1898 = vunpack.c.l.b16 %v1558
    %v1899 = vunpack.c.h.b16 %v1558
    %v1900 = vunpack.c.l.b16 %v1559
    %v1901 = vunpack.c.h.b16 %v1559
    %v1902 = vunpack.c.l.b16 %v1560
    %v1903 = vunpack.c.h.b16 %v1560
    %v1904 = vunpack.c.l.b16 %v1561
    %v1905 = vunpack.c.h.b16 %v1561
    %v1906 = vunpack.c.l.b16 %v1562
    %v1907 = vunpack.c.h.b16 %v1562
    %v1908 = vunpack.c.l.b16 %v1563
    %v1909 = vunpack.c.h.b16 %v1563
    %v1910 = vunpack.c.l.b16 %v1564
    %v1911 = vunpack.c.h.b16 %v1564
    %v1912 = vunpack.c.l.b16 %v1565
    %v1913 = vunpack.c.h.b16 %v1565
    %v1914 = vunpack.c.l.b16 %v1566
    %v1915 = vunpack.c.h.b16 %v1566
    %v1916 = vunpack.c.l.b16 %v1567
    %v1917 = vunpack.c.h.b16 %v1567
    %v1918 = vunpack.c.l.b16 %v1568
    %v1919 = vunpack.c.h.b16 %v1568
    %v1920 = vunpack.c.l.b16 %v1569
    %v1921 = vunpack.c.h.b16 %v1569
    %v1922 = vunpack.c.l.b16 %v1570
    %v1923 = vunpack.c.h.b16 %v1570
    %v1924 = vunpack.c.l.b16 %v1571
    %v1925 = vunpack.c.h.b16 %v1571
    %v1926 = vunpack.c.l.b16 %v1572
    %v1927 = vunpack.c.h.b16 %v1572
    %v1928 = vunpack.c.l.b16 %v1573
    %v1929 = vunpack.c.h.b16 %v1573
    %v1930 = vunpack.c.l.b16 %v1574
    %v1931 = vunpack.c.h.b16 %v1574
    %v1932 = vunpack.c.l.b16 %v1575
    %v1933 = vunpack.c.h.b16 %v1575
    %v1934 = vunpack.c.l.b16 %v1576
    %v1935 = vunpack.c.h.b16 %v1576
    %v1936 = vunpack.c.l.b16 %v1577
    %v1937 = vunpack.c.h.b16 %v1577
    %v1938 = vunpack.c.l.b16 %v1578
    %v1939 = vunpack.c.h.b16 %v1578
    %v1940 = vunpack.c.l.b16 %v1579
    %v1941 = vunpack.c.h.b16 %v1579
    %v1942 = vunpack.c.l.b16 %v1580
    %v1943 = vunpack.c.h.b16 %v1580
    %v1944 = vunpack.c.l.b16 %v1581
    %v1945 = vunpack.c.h.b16 %v1581
    %v1946 = vunpack.c.l.b16 %v1582
    %v1947 = vunpack.c.h.b16 %v1582
    %v1948 = vunpack.c.l.b16 %v1583
    %v1949 = vunpack.c.h.b16 %v1583
    %v1950 = vunpack.c.l.b16 %v1584
    %v1951 = vunpack.c.h.b16 %v1584
    %v1952 = vunpack.c.l.b16 %v1585
    %v1953 = vunpack.c.h.b16 %v1585
    %v1954 = vunpack.c.l.b16 %v1586
    %v1955 = vunpack.c.h.b16 %v1586
    %v1956 = vunpack.c.l.b16 %v1587
    %v1957 = vunpack.c.h.b16 %v1587
    %v1958 = vunpack.c.l.b16 %v1588
    %v1959 = vunpack.c.h.b16 %v1588
    %v1960 = vunpack.c.l.b16 %v1589
    %v1961 = vunpack.c.h.b16 %v1589
    %v1962 = vunpack.c.l.b16 %v1590
    %v1963 = vunpack.c.h.b16 %v1590
    %v1964 = vunpack.c.l.b16 %v1591
    %v1965 = vunpack.c.h.b16 %v1591
    %v1966 = vunpack.c.l.b16 %v1592
    %v1967 = vunpack.c.h.b16 %v1592
    %v1968 = vunpack.c.l.b16 %v1593
    %v1969 = vunpack.c.h.b16 %v1593
    %v1970 = vunpack.c.l.b16 %v1594
    %v1971 = vunpack.c.h.b16 %v1594
    %v1972 = vunpack.c.l.b16 %v1595
    %v1973 = vunpack.c.h.b16 %v1595
    %v1974 = vunpack.c.l.b16 %v1596
    %v1975 = vunpack.c.h.b16 %v1596
    %v1976 = vunpack.c.l.b16 %v1597
    %v1977 = vunpack.c.h.b16 %v1597
    %v1978 = vunpack.c.l.b16 %v1598
    %v1979 = vunpack.c.h.b16 %v1598
    %v1980 = vunpack.c.l.b16 %v1599
    %v1981 = vunpack.c.h.b16 %v1599
    %v1982 = vunpack.c.l.b16 %v1600
    %v1983 = vunpack.c.h.b16 %v1600
    %v1984 = vunpack.c.l.b16 %v1601
    %v1985 = vunpack.c.h.b16 %v1601
    %v1986 = vpack.c.b16 %v1734, %v1730
    %v1987 = vpack.c.b16 %v1735, %v1731
    %v1988 = vpack.c.b16 %v1736, %v1732
    %v1989 = vpack.c.b16 %v1737, %v1733
    %v1990 = vpack.c.b16 %v1742, %v1738
    %v1991 = vpack.c.b16 %v1743, %v1739
    %v1992 = vpack.c.b16 %v1744, %v1740
    %v1993 = vpack.c.b16 %v1745, %v1741
    %v1994 = vpack.c.b16 %v1750, %v1746
    %v1995 = vpack.c.b16 %v1751, %v1747
    %v1996 = vpack.c.b16 %v1752, %v1748
    %v1997 = vpack.c.b16 %v1753, %v1749
    %v1998 = vpack.c.b16 %v1758, %v1754
    %v1999 = vpack.c.b16 %v1759, %v1755
    %v2000 = vpack.c.b16 %v1760, %v1756
    %v2001 = vpack.c.b16 %v1761, %v1757
    %v2002 = vpack.c.b16 %v1766, %v1762
    %v2003 = vpack.c.b16 %v1767, %v1763
    %v2004 = vpack.c.b16 %v1768, %v1764
    %v2005 = vpack.c.b16 %v1769, %v1765
    %v2006 = vpack.c.b16 %v1774, %v1770
    %v2007 = vpack.c.b16 %v1775, %v1771
    %v2008 = vpack.c.b16 %v1776, %v1772
    %v2009 = vpack.c.b16 %v1777, %v1773
    %v2010 = vpack.c.b16 %v1782, %v1778
    %v2011 = vpack.c.b16 %v1783, %v1779
    %v2012 = vpack.c.b16 %v1784, %v1780
    %v2013 = vpack.c.b16 %v1785, %v1781
    %v2014 = vpack.c.b16 %v1790, %v1786
    %v2015 = vpack.c.b16 %v1791, %v1787
    %v2016 = vpack.c.b16 %v1792, %v1788
    %v2017 = vpack.c.b16 %v1793, %v1789
    %v2018 = vpack.c.b16 %v1798, %v1794
    %v2019 = vpack.c.b16 %v1799, %v1795
    %v2020 = vpack.c.b16 %v1800, %v1796
    %v2021 = vpack.c.b16 %v1801, %v1797
    %v2022 = vpack.c.b16 %v1806, %v1802
    %v2023 = vpack.c.b16 %v1807, %v1803
    %v2024 = vpack.c.b16 %v1808, %v1804
    %v2025 = vpack.c.b16 %v1809, %v1805
    %v2026 = vpack.c.b16 %v1814, %v1810
    %v2027 = vpack.c.b16 %v1815, %v1811
    %v2028 = vpack.c.b16 %v1816, %v1812
    %v2029 = vpack.c.b16 %v1817, %v1813
    %v2030 = vpack.c.b16 %v1822, %v1818
    %v2031 = vpack.c.b16 %v1823, %v1819
    %v2032 = vpack.c.b16 %v1824, %v1820
    %v2033 = vpack.c.b16 %v1825, %v1821
    %v2034 = vpack.c.b16 %v1830, %v1826
    %v2035 = vpack.c.b16 %v1831, %v1827
    %v2036 = vpack.c.b16 %v1832, %v1828
    %v2037 = vpack.c.b16 %v1833, %v1829
    %v2038 = vpack.c.b16 %v1838, %v1834
    %v2039 = vpack.c.b16 %v1839, %v1835
    %v2040 = vpack.c.b16 %v1840, %v1836
    %v2041 = vpack.c.b16 %v1841, %v1837
    %v2042 = vpack.c.b16 %v1846, %v1842
    %v2043 = vpack.c.b16 %v1847, %v1843
    %v2044 = vpack.c.b16 %v1848, %v1844
    %v2045 = vpack.c.b16 %v1849, %v1845
    %v2046 = vpack.c.b16 %v1854, %v1850
    %v2047 = vpack.c.b16 %v1855, %v1851
    %v2048 = vpack.c.b16 %v1856, %v1852
    %v2049 = vpack.c.b16 %v1857, %v1853
    %v2050 = vpack.c.b16 %v1862, %v1858
    %v2051 = vpack.c.b16 %v1863, %v1859
    %v2052 = vpack.c.b16 %v1864, %v1860
    %v2053 = vpack.c.b16 %v1865, %v1861
    %v2054 = vpack.c.b16 %v1870, %v1866
    %v2055 = vpack.c.b16 %v1871, %v1867
    %v2056 = vpack.c.b16 %v1872, %v1868
    %v2057 = vpack.c.b16 %v1873, %v1869
    %v2058 = vpack.c.b16 %v1878, %v1874
    %v2059 = vpack.c.b16 %v1879, %v1875
    %v2060 = vpack.c.b16 %v1880, %v1876
    %v2061 = vpack.c.b16 %v1881, %v1877
    %v2062 = vpack.c.b16 %v1886, %v1882
    %v2063 = vpack.c.b16 %v1887, %v1883
    %v2064 = vpack.c.b16 %v1888, %v1884
    %v2065 = vpack.c.b16 %v1889, %v1885
    %v2066 = vpack.c.b16 %v1894, %v1890
    %v2067 = vpack.c.b16 %v1895, %v1891
    %v2068 = vpack.c.b16 %v1896, %v1892
    %v2069 = vpack.c.b16 %v1897, %v1893
    %v2070 = vpack.c.b16 %v1902, %v1898
    %v2071 = vpack.c.b16 %v1903, %v1899
    %v2072 = vpack.c.b16 %v1904, %v1900
    %v2073 = vpack.c.b16 %v1905, %v1901
    %v2074 = vpack.c.b16 %v1910, %v1906
    %v2075 = vpack.c.b16 %v1911, %v1907
    %v2076 = vpack.c.b16 %v1912, %v1908
    %v2077 = vpack.c.b16 %v1913, %v1909
    %v2078 = vpack.c.b16 %v1918, %v1914
    %v2079 = vpack.c.b16 %v1919, %v1915
    %v2080 = vpack.c.b16 %v1920, %v1916
    %v2081 = vpack.c.b16 %v1921, %v1917
    %v2082 = vpack.c.b16 %v1926, %v1922
    %v2083 = vpack.c.b16 %v1927, %v1923
    %v2084 = vpack.c.b16 %v1928, %v1924
    %v2085 = vpack.c.b16 %v1929, %v1925
    %v2086 = vpack.c.b16 %v1934, %v1930
    %v2087 = vpack.c.b16 %v1935, %v1931
    %v2088 = vpack.c.b16 %v1936, %v1932
    %v2089 = vpack.c.b16 %v1937, %v1933
    %v2090 = vpack.c.b16 %v1942, %v1938
    %v2091 = vpack.c.b16 %v1943, %v1939
    %v2092 = vpack.c.b16 %v1944, %v1940
    %v2093 = vpack.c.b16 %v1945, %v1941
    %v2094 = vpack.c.b16 %v1950, %v1946
    %v2095 = vpack.c.b16 %v1951, %v1947
    %v2096 = vpack.c.b16 %v1952, %v1948
    %v2097 = vpack.c.b16 %v1953, %v1949
    %v2098 = vpack.c.b16 %v1958, %v1954
    %v2099 = vpack.c.b16 %v1959, %v1955
    %v2100 = vpack.c.b16 %v1960, %v1956
    %v2101 = vpack.c.b16 %v1961, %v1957
    %v2102 = vpack.c.b16 %v1966, %v1962
    %v2103 = vpack.c.b16 %v1967, %v1963
    %v2104 = vpack.c.b16 %v1968, %v1964
    %v2105 = vpack.c.b16 %v1969, %v1965
    %v2106 = vpack.c.b16 %v1974, %v1970
    %v2107 = vpack.c.b16 %v1975, %v1971
    %v2108 = vpack.c.b16 %v1976, %v1972
    %v2109 = vpack.c.b16 %v1977, %v1973
    %v2110 = vpack.c.b16 %v1982, %v1978
    %v2111 = vpack.c.b16 %v1983, %v1979
    %v2112 = vpack.c.b16 %v1984, %v1980
    %v2113 = vpack.c.b16 %v1985, %v1981
    %2242 = vmatpush.bf16.msra.mxu0 %v2014
    %2243 = vmatpush.bf16.msra.mxu0 %v2010
    %2244 = vmatpush.bf16.msra.mxu0 %v2006
    %2245 = vmatpush.bf16.msra.mxu0 %v2002
    %2246 = vmatpush.bf16.msra.mxu0 %v1998
    %2247 = vmatpush.bf16.msra.mxu0 %v1994
    %2248 = vmatpush.bf16.msra.mxu0 %v1990
    %2249 = vmatpush.bf16.msra.mxu0 %v1986
    %2250 = vmatmul.bf16.gmra.mxu0 %v1470
    %v2251 = vpop.f32.mrf.mxu0
    %v2252 = vadd.f32 0.0, %v2251
    %v2253 = vpop.f32.mrf.mxu0
    %2254 = vdwg.mxu0
    %2255 = vmatpush.bf16.msra.mxu0 %v2046
    %2256 = vmatpush.bf16.msra.mxu0 %v2042
    %2257 = vmatpush.bf16.msra.mxu0 %v2038
    %2258 = vmatpush.bf16.msra.mxu0 %v2034
    %2259 = vmatpush.bf16.msra.mxu0 %v2030
    %2260 = vmatpush.bf16.msra.mxu0 %v2026
    %2261 = vmatpush.bf16.msra.mxu0 %v2022
    %2262 = vmatpush.bf16.msra.mxu0 %v2018
    %2263 = vmatmul.bf16.gmra.mxu0 %v1471
    %v2264 = vpop.f32.mrf.mxu0
    %v2265 = vadd.f32 %v2252, %v2264
    %v2266 = vpop.f32.mrf.mxu0
    %2267 = vdwg.mxu0
    %2268 = vmatpush.bf16.msra.mxu0 %v2078
    %2269 = vmatpush.bf16.msra.mxu0 %v2074
    %2270 = vmatpush.bf16.msra.mxu0 %v2070
    %2271 = vmatpush.bf16.msra.mxu0 %v2066
    %2272 = vmatpush.bf16.msra.mxu0 %v2062
    %2273 = vmatpush.bf16.msra.mxu0 %v2058
    %2274 = vmatpush.bf16.msra.mxu0 %v2054
    %2275 = vmatpush.bf16.msra.mxu0 %v2050
    %2276 = vmatmul.bf16.gmra.mxu0 %v1472
    %v2277 = vpop.f32.mrf.mxu0
    %v2278 = vadd.f32 %v2265, %v2277
    %v2279 = vpop.f32.mrf.mxu0
    %2280 = vdwg.mxu0
    %2281 = vmatpush.bf16.msra.mxu0 %v2110
    %2282 = vmatpush.bf16.msra.mxu0 %v2106
    %2283 = vmatpush.bf16.msra.mxu0 %v2102
    %2284 = vmatpush.bf16.msra.mxu0 %v2098
    %2285 = vmatpush.bf16.msra.mxu0 %v2094
    %2286 = vmatpush.bf16.msra.mxu0 %v2090
    %2287 = vmatpush.bf16.msra.mxu0 %v2086
    %2288 = vmatpush.bf16.msra.mxu0 %v2082
    %2289 = vmatmul.bf16.gmra.mxu0 %v1473
    %v2290 = vpop.f32.mrf.mxu0
    %v2291 = vadd.f32 %v2278, %v2290
    %v2292 = vpop.f32.mrf.mxu0
    %2293 = vdwg.mxu0
    %2294 = vmatpush.bf16.msra.mxu0 %v2015
    %2295 = vmatpush.bf16.msra.mxu0 %v2011
    %2296 = vmatpush.bf16.msra.mxu0 %v2007
    %2297 = vmatpush.bf16.msra.mxu0 %v2003
    %2298 = vmatpush.bf16.msra.mxu0 %v1999
    %2299 = vmatpush.bf16.msra.mxu0 %v1995
    %2300 = vmatpush.bf16.msra.mxu0 %v1991
    %2301 = vmatpush.bf16.msra.mxu0 %v1987
    %2302 = vmatmul.bf16.gmra.mxu0 %v1470
    %v2303 = vpop.f32.mrf.mxu0
    %v2304 = vadd.f32 0.0, %v2303
    %v2305 = vpop.f32.mrf.mxu0
    %2306 = vdwg.mxu0
    %2307 = vmatpush.bf16.msra.mxu0 %v2047
    %2308 = vmatpush.bf16.msra.mxu0 %v2043
    %2309 = vmatpush.bf16.msra.mxu0 %v2039
    %2310 = vmatpush.bf16.msra.mxu0 %v2035
    %2311 = vmatpush.bf16.msra.mxu0 %v2031
    %2312 = vmatpush.bf16.msra.mxu0 %v2027
    %2313 = vmatpush.bf16.msra.mxu0 %v2023
    %2314 = vmatpush.bf16.msra.mxu0 %v2019
    %2315 = vmatmul.bf16.gmra.mxu0 %v1471
    %v2316 = vpop.f32.mrf.mxu0
    %v2317 = vadd.f32 %v2304, %v2316
    %v2318 = vpop.f32.mrf.mxu0
    %2319 = vdwg.mxu0
    %2320 = vmatpush.bf16.msra.mxu0 %v2079
    %2321 = vmatpush.bf16.msra.mxu0 %v2075
    %2322 = vmatpush.bf16.msra.mxu0 %v2071
    %2323 = vmatpush.bf16.msra.mxu0 %v2067
    %2324 = vmatpush.bf16.msra.mxu0 %v2063
    %2325 = vmatpush.bf16.msra.mxu0 %v2059
    %2326 = vmatpush.bf16.msra.mxu0 %v2055
    %2327 = vmatpush.bf16.msra.mxu0 %v2051
    %2328 = vmatmul.bf16.gmra.mxu0 %v1472
    %v2329 = vpop.f32.mrf.mxu0
    %v2330 = vadd.f32 %v2317, %v2329
    %v2331 = vpop.f32.mrf.mxu0
    %2332 = vdwg.mxu0
    %2333 = vmatpush.bf16.msra.mxu0 %v2111
    %2334 = vmatpush.bf16.msra.mxu0 %v2107
    %2335 = vmatpush.bf16.msra.mxu0 %v2103
    %2336 = vmatpush.bf16.msra.mxu0 %v2099
    %2337 = vmatpush.bf16.msra.mxu0 %v2095
    %2338 = vmatpush.bf16.msra.mxu0 %v2091
    %2339 = vmatpush.bf16.msra.mxu0 %v2087
    %2340 = vmatpush.bf16.msra.mxu0 %v2083
    %2341 = vmatmul.bf16.gmra.mxu0 %v1473
    %v2342 = vpop.f32.mrf.mxu0
    %v2343 = vadd.f32 %v2330, %v2342
    %v2344 = vpop.f32.mrf.mxu0
    %2345 = vdwg.mxu0
    %2346 = vmatpush.bf16.msra.mxu0 %v2016
    %2347 = vmatpush.bf16.msra.mxu0 %v2012
    %2348 = vmatpush.bf16.msra.mxu0 %v2008
    %2349 = vmatpush.bf16.msra.mxu0 %v2004
    %2350 = vmatpush.bf16.msra.mxu0 %v2000
    %2351 = vmatpush.bf16.msra.mxu0 %v1996
    %2352 = vmatpush.bf16.msra.mxu0 %v1992
    %2353 = vmatpush.bf16.msra.mxu0 %v1988
    %2354 = vmatmul.bf16.gmra.mxu0 %v1470
    %v2355 = vpop.f32.mrf.mxu0
    %v2356 = vadd.f32 0.0, %v2355
    %v2357 = vpop.f32.mrf.mxu0
    %2358 = vdwg.mxu0
    %2359 = vmatpush.bf16.msra.mxu0 %v2048
    %2360 = vmatpush.bf16.msra.mxu0 %v2044
    %2361 = vmatpush.bf16.msra.mxu0 %v2040
    %2362 = vmatpush.bf16.msra.mxu0 %v2036
    %2363 = vmatpush.bf16.msra.mxu0 %v2032
    %2364 = vmatpush.bf16.msra.mxu0 %v2028
    %2365 = vmatpush.bf16.msra.mxu0 %v2024
    %2366 = vmatpush.bf16.msra.mxu0 %v2020
    %2367 = vmatmul.bf16.gmra.mxu0 %v1471
    %v2368 = vpop.f32.mrf.mxu0
    %v2369 = vadd.f32 %v2356, %v2368
    %v2370 = vpop.f32.mrf.mxu0
    %2371 = vdwg.mxu0
    %2372 = vmatpush.bf16.msra.mxu0 %v2080
    %2373 = vmatpush.bf16.msra.mxu0 %v2076
    %2374 = vmatpush.bf16.msra.mxu0 %v2072
    %2375 = vmatpush.bf16.msra.mxu0 %v2068
    %2376 = vmatpush.bf16.msra.mxu0 %v2064
    %2377 = vmatpush.bf16.msra.mxu0 %v2060
    %2378 = vmatpush.bf16.msra.mxu0 %v2056
    %2379 = vmatpush.bf16.msra.mxu0 %v2052
    %2380 = vmatmul.bf16.gmra.mxu0 %v1472
    %v2381 = vpop.f32.mrf.mxu0
    %v2382 = vadd.f32 %v2369, %v2381
    %v2383 = vpop.f32.mrf.mxu0
    %2384 = vdwg.mxu0
    %2385 = vmatpush.bf16.msra.mxu0 %v2112
    %2386 = vmatpush.bf16.msra.mxu0 %v2108
    %2387 = vmatpush.bf16.msra.mxu0 %v2104
    %2388 = vmatpush.bf16.msra.mxu0 %v2100
    %2389 = vmatpush.bf16.msra.mxu0 %v2096
    %2390 = vmatpush.bf16.msra.mxu0 %v2092
    %2391 = vmatpush.bf16.msra.mxu0 %v2088
    %2392 = vmatpush.bf16.msra.mxu0 %v2084
    %2393 = vmatmul.bf16.gmra.mxu0 %v1473
    %v2394 = vpop.f32.mrf.mxu0
    %v2395 = vadd.f32 %v2382, %v2394
    %v2396 = vpop.f32.mrf.mxu0
    %2397 = vdwg.mxu0
    %2398 = vmatpush.bf16.msra.mxu0 %v2017
    %2399 = vmatpush.bf16.msra.mxu0 %v2013
    %2400 = vmatpush.bf16.msra.mxu0 %v2009
    %2401 = vmatpush.bf16.msra.mxu0 %v2005
    %2402 = vmatpush.bf16.msra.mxu0 %v2001
    %2403 = vmatpush.bf16.msra.mxu0 %v1997
    %2404 = vmatpush.bf16.msra.mxu0 %v1993
    %2405 = vmatpush.bf16.msra.mxu0 %v1989
    %2406 = vmatmul.bf16.gmra.mxu0 %v1470
    %v2407 = vpop.f32.mrf.mxu0
    %v2408 = vadd.f32 0.0, %v2407
    %v2409 = vpop.f32.mrf.mxu0
    %2410 = vdwg.mxu0
    %2411 = vmatpush.bf16.msra.mxu0 %v2049
    %2412 = vmatpush.bf16.msra.mxu0 %v2045
    %2413 = vmatpush.bf16.msra.mxu0 %v2041
    %2414 = vmatpush.bf16.msra.mxu0 %v2037
    %2415 = vmatpush.bf16.msra.mxu0 %v2033
    %2416 = vmatpush.bf16.msra.mxu0 %v2029
    %2417 = vmatpush.bf16.msra.mxu0 %v2025
    %2418 = vmatpush.bf16.msra.mxu0 %v2021
    %2419 = vmatmul.bf16.gmra.mxu0 %v1471
    %v2420 = vpop.f32.mrf.mxu0
    %v2421 = vadd.f32 %v2408, %v2420
    %v2422 = vpop.f32.mrf.mxu0
    %2423 = vdwg.mxu0
    %2424 = vmatpush.bf16.msra.mxu0 %v2081
    %2425 = vmatpush.bf16.msra.mxu0 %v2077
    %2426 = vmatpush.bf16.msra.mxu0 %v2073
    %2427 = vmatpush.bf16.msra.mxu0 %v2069
    %2428 = vmatpush.bf16.msra.mxu0 %v2065
    %2429 = vmatpush.bf16.msra.mxu0 %v2061
    %2430 = vmatpush.bf16.msra.mxu0 %v2057
    %2431 = vmatpush.bf16.msra.mxu0 %v2053
    %2432 = vmatmul.bf16.gmra.mxu0 %v1472
    %v2433 = vpop.f32.mrf.mxu0
    %v2434 = vadd.f32 %v2421, %v2433
    %v2435 = vpop.f32.mrf.mxu0
    %2436 = vdwg.mxu0
    %2437 = vmatpush.bf16.msra.mxu0 %v2113
    %2438 = vmatpush.bf16.msra.mxu0 %v2109
    %2439 = vmatpush.bf16.msra.mxu0 %v2105
    %2440 = vmatpush.bf16.msra.mxu0 %v2101
    %2441 = vmatpush.bf16.msra.mxu0 %v2097
    %2442 = vmatpush.bf16.msra.mxu0 %v2093
    %2443 = vmatpush.bf16.msra.mxu0 %v2089
    %2444 = vmatpush.bf16.msra.mxu0 %v2085
    %2445 = vmatmul.bf16.gmra.mxu0 %v1473
    %v2446 = vpop.f32.mrf.mxu0
    %v2447 = vadd.f32 %v2434, %v2446
    %v2448 = vpop.f32.mrf.mxu0
    %2449 = vdwg.mxu0
    %v2450 = vpack.c.bf16 %v2343, %v2291
    %v2451 = vpack.c.bf16 %v2447, %v2395
    %v2452 = vld [vmem:[%s5] sm:$0xf]
    %v2454 = vperm.slane %v2452, 0
    %v2455 = vperm.slane %v2452, 1
    %v2456 = vperm.slane %v2452, 2
    %v2457 = vperm.slane %v2452, 3
    %v2462 = vpack.c.bf16 %v2455, %v2454
    %v2463 = vpack.c.bf16 %v2457, %v2456
    %v2466 = vunpack.c.l.b16 %v2462
    %v2467 = vunpack.c.h.b16 %v2462
    %v2468 = vunpack.c.l.b16 %v2463
    %v2469 = vunpack.c.h.b16 %v2463
    %v2470 = vpack.c.b16 %v2466, %v2466
    %v2471 = vpack.c.b16 %v2467, %v2467
    %v2472 = vpack.c.b16 %v2468, %v2468
    %v2473 = vpack.c.b16 %v2469, %v2469
    %v2475 = vpack.i.b16 %v2470, %v2470
    %v2477 = vperm.slane %v2475, 0
    %v2479 = vpack.i.b16 %v2471, %v2471
    %v2481 = vperm.slane %v2479, 0
    %v2483 = vpack.i.b16 %v2472, %v2472
    %v2485 = vperm.slane %v2483, 0
    %v2487 = vpack.i.b16 %v2473, %v2473
    %v2489 = vperm.slane %v2487, 0
    %v2490 = vunpack.c.l.bf16 %v2450
    %v2491 = vunpack.c.h.bf16 %v2450
    %v2492 = vunpack.c.l.bf16 %v2451
    %v2493 = vunpack.c.h.bf16 %v2451
    %v2494 = vunpack.c.l.bf16 %v2477
    %v2495 = vunpack.c.l.bf16 %v2481
    %v2496 = vunpack.c.l.bf16 %v2485
    %v2497 = vunpack.c.l.bf16 %v2489
    %v2498 = vadd.f32 %v2490, %v2494
    %v2499 = vadd.f32 %v2491, %v2495
    %v2500 = vadd.f32 %v2492, %v2496
    %v2501 = vadd.f32 %v2493, %v2497
    %v2502 = vpack.c.bf16 %v2499, %v2498
    %v2503 = vpack.c.bf16 %v2501, %v2500
    %v2504 = vunpack.c.l.bf16 %v2502
    %v2505 = vunpack.c.h.bf16 %v2502
    %v2506 = vunpack.c.l.bf16 %v2503
    %v2507 = vunpack.c.h.bf16 %v2503
    %v2508 = vmul.f32 %v2504, 0.5
    %v2509 = vmul.f32 %v2505, 0.5
    %v2510 = vmul.f32 %v2506, 0.5
    %v2511 = vmul.f32 %v2507, 0.5
    %v2512 = vpack.c.bf16 %v2509, %v2508
    %v2513 = vpack.c.bf16 %v2511, %v2510
    %v2514 = vunpack.c.l.bf16 %v2512
    %v2515 = vunpack.c.h.bf16 %v2512
    %v2516 = vunpack.c.l.bf16 %v2513
    %v2517 = vunpack.c.h.bf16 %v2513
    %v2518 = vtanh.pop %v2514
    %v2519 = vtanh.pop %v2515
    %v2520 = vtanh.pop %v2516
    %v2521 = vtanh.pop %v2517
    %v2522 = vpack.c.bf16 %v2519, %v2518
    %v2523 = vpack.c.bf16 %v2521, %v2520
    %v2524 = vunpack.c.l.bf16 %v2522
    %v2525 = vunpack.c.h.bf16 %v2522
    %v2526 = vunpack.c.l.bf16 %v2523
    %v2527 = vunpack.c.h.bf16 %v2523
    %v2528 = vadd.f32 %v2524, 1.0
    %v2529 = vadd.f32 %v2525, 1.0
    %v2530 = vadd.f32 %v2526, 1.0
    %v2531 = vadd.f32 %v2527, 1.0
    %v2532 = vpack.c.bf16 %v2529, %v2528
    %v2533 = vpack.c.bf16 %v2531, %v2530
    %v2534 = vunpack.c.l.bf16 %v2532
    %v2535 = vunpack.c.h.bf16 %v2532
    %v2536 = vunpack.c.l.bf16 %v2533
    %v2537 = vunpack.c.h.bf16 %v2533
    %v2538 = vmul.f32 %v2534, 0.5
    %v2539 = vmul.f32 %v2535, 0.5
    %v2540 = vmul.f32 %v2536, 0.5
    %v2541 = vmul.f32 %v2537, 0.5
    %v2542 = vpack.c.bf16 %v2539, %v2538
    %v2543 = vpack.c.bf16 %v2541, %v2540
    %v2544 = vunpack.c.l.bf16 %v2542
    %v2545 = vunpack.c.h.bf16 %v2542
    %v2546 = vunpack.c.l.bf16 %v2543
    %v2547 = vunpack.c.h.bf16 %v2543
    %v2548 = vmul.f32 %v2504, %v2544
    %v2549 = vmul.f32 %v2505, %v2545
    %v2550 = vmul.f32 %v2506, %v2546
    %v2551 = vmul.f32 %v2507, %v2547
    %v2552 = vpack.c.bf16 %v2548, %v2548
    %v2553 = vpack.c.bf16 %v2549, %v2549
    %v2554 = vpack.c.bf16 %v2550, %v2550
    %v2555 = vpack.c.bf16 %v2551, %v2551
    %v2556 = vld [vmem:[#allocation8] sm:$0xf]
    %v2557 = vld [vmem:[#allocation8 + $0x4] sm:$0xf]
    %v2558 = vld [vmem:[#allocation8 + $0x8] sm:$0xf]
    %v2559 = vld [vmem:[#allocation8 + $0xc] sm:$0xf]
    %v2560 = vld [vmem:[#allocation8 + $0x10] sm:$0xf]
    %v2561 = vld [vmem:[#allocation8 + $0x14] sm:$0xf]
    %v2562 = vld [vmem:[#allocation8 + $0x18] sm:$0xf]
    %v2563 = vld [vmem:[#allocation8 + $0x1c] sm:$0xf]
    %v2564 = vld [vmem:[#allocation8 + $0x20] sm:$0xf]
    %v2565 = vld [vmem:[#allocation8 + $0x24] sm:$0xf]
    %v2566 = vld [vmem:[#allocation8 + $0x28] sm:$0xf]
    %v2567 = vld [vmem:[#allocation8 + $0x2c] sm:$0xf]
    %v2568 = vld [vmem:[#allocation8 + $0x30] sm:$0xf]
    %v2569 = vld [vmem:[#allocation8 + $0x34] sm:$0xf]
    %v2570 = vld [vmem:[#allocation8 + $0x38] sm:$0xf]
    %v2571 = vld [vmem:[#allocation8 + $0x3c] sm:$0xf]
    %v2572 = vld [vmem:[#allocation8 + $0x40] sm:$0xf]
    %v2573 = vld [vmem:[#allocation8 + $0x44] sm:$0xf]
    %v2574 = vld [vmem:[#allocation8 + $0x48] sm:$0xf]
    %v2575 = vld [vmem:[#allocation8 + $0x4c] sm:$0xf]
    %v2576 = vld [vmem:[#allocation8 + $0x50] sm:$0xf]
    %v2577 = vld [vmem:[#allocation8 + $0x54] sm:$0xf]
    %v2578 = vld [vmem:[#allocation8 + $0x58] sm:$0xf]
    %v2579 = vld [vmem:[#allocation8 + $0x5c] sm:$0xf]
    %v2580 = vld [vmem:[#allocation8 + $0x60] sm:$0xf]
    %v2581 = vld [vmem:[#allocation8 + $0x64] sm:$0xf]
    %v2582 = vld [vmem:[#allocation8 + $0x68] sm:$0xf]
    %v2583 = vld [vmem:[#allocation8 + $0x6c] sm:$0xf]
    %v2584 = vld [vmem:[#allocation8 + $0x70] sm:$0xf]
    %v2585 = vld [vmem:[#allocation8 + $0x74] sm:$0xf]
    %v2586 = vld [vmem:[#allocation8 + $0x78] sm:$0xf]
    %v2587 = vld [vmem:[#allocation8 + $0x7c] sm:$0xf]
    %v2588 = vld [vmem:[#allocation8 + $0x80] sm:$0xf]
    %v2589 = vld [vmem:[#allocation8 + $0x84] sm:$0xf]
    %v2590 = vld [vmem:[#allocation8 + $0x88] sm:$0xf]
    %v2591 = vld [vmem:[#allocation8 + $0x8c] sm:$0xf]
    %v2592 = vld [vmem:[#allocation8 + $0x90] sm:$0xf]
    %v2593 = vld [vmem:[#allocation8 + $0x94] sm:$0xf]
    %v2594 = vld [vmem:[#allocation8 + $0x98] sm:$0xf]
    %v2595 = vld [vmem:[#allocation8 + $0x9c] sm:$0xf]
    %v2596 = vld [vmem:[#allocation8 + $0xa0] sm:$0xf]
    %v2597 = vld [vmem:[#allocation8 + $0xa4] sm:$0xf]
    %v2598 = vld [vmem:[#allocation8 + $0xa8] sm:$0xf]
    %v2599 = vld [vmem:[#allocation8 + $0xac] sm:$0xf]
    %v2600 = vld [vmem:[#allocation8 + $0xb0] sm:$0xf]
    %v2601 = vld [vmem:[#allocation8 + $0xb4] sm:$0xf]
    %v2602 = vld [vmem:[#allocation8 + $0xb8] sm:$0xf]
    %v2603 = vld [vmem:[#allocation8 + $0xbc] sm:$0xf]
    %v2604 = vld [vmem:[#allocation8 + $0xc0] sm:$0xf]
    %v2605 = vld [vmem:[#allocation8 + $0xc4] sm:$0xf]
    %v2606 = vld [vmem:[#allocation8 + $0xc8] sm:$0xf]
    %v2607 = vld [vmem:[#allocation8 + $0xcc] sm:$0xf]
    %v2608 = vld [vmem:[#allocation8 + $0xd0] sm:$0xf]
    %v2609 = vld [vmem:[#allocation8 + $0xd4] sm:$0xf]
    %v2610 = vld [vmem:[#allocation8 + $0xd8] sm:$0xf]
    %v2611 = vld [vmem:[#allocation8 + $0xdc] sm:$0xf]
    %v2612 = vld [vmem:[#allocation8 + $0xe0] sm:$0xf]
    %v2613 = vld [vmem:[#allocation8 + $0xe4] sm:$0xf]
    %v2614 = vld [vmem:[#allocation8 + $0xe8] sm:$0xf]
    %v2615 = vld [vmem:[#allocation8 + $0xec] sm:$0xf]
    %v2616 = vld [vmem:[#allocation8 + $0xf0] sm:$0xf]
    %v2617 = vld [vmem:[#allocation8 + $0xf4] sm:$0xf]
    %v2618 = vld [vmem:[#allocation8 + $0xf8] sm:$0xf]
    %v2619 = vld [vmem:[#allocation8 + $0xfc] sm:$0xf]
    %v2620 = vld [vmem:[%s7] sm:$0x1]
    %v2622 = vperm.slane %v2620, 0
    %v2688 = vunpack.c.l.b16 %v2556
    %v2689 = vunpack.c.l.b16 %v2557
    %v2690 = vunpack.c.l.b16 %v2558
    %v2691 = vunpack.c.l.b16 %v2559
    %v2692 = vunpack.c.l.b16 %v2560
    %v2693 = vunpack.c.l.b16 %v2561
    %v2694 = vunpack.c.l.b16 %v2562
    %v2695 = vunpack.c.l.b16 %v2563
    %v2696 = vunpack.c.l.b16 %v2564
    %v2697 = vunpack.c.l.b16 %v2565
    %v2698 = vunpack.c.l.b16 %v2566
    %v2699 = vunpack.c.l.b16 %v2567
    %v2700 = vunpack.c.l.b16 %v2568
    %v2701 = vunpack.c.l.b16 %v2569
    %v2702 = vunpack.c.l.b16 %v2570
    %v2703 = vunpack.c.l.b16 %v2571
    %v2704 = vunpack.c.l.b16 %v2572
    %v2705 = vunpack.c.l.b16 %v2573
    %v2706 = vunpack.c.l.b16 %v2574
    %v2707 = vunpack.c.l.b16 %v2575
    %v2708 = vunpack.c.l.b16 %v2576
    %v2709 = vunpack.c.l.b16 %v2577
    %v2710 = vunpack.c.l.b16 %v2578
    %v2711 = vunpack.c.l.b16 %v2579
    %v2712 = vunpack.c.l.b16 %v2580
    %v2713 = vunpack.c.l.b16 %v2581
    %v2714 = vunpack.c.l.b16 %v2582
    %v2715 = vunpack.c.l.b16 %v2583
    %v2716 = vunpack.c.l.b16 %v2584
    %v2717 = vunpack.c.l.b16 %v2585
    %v2718 = vunpack.c.l.b16 %v2586
    %v2719 = vunpack.c.l.b16 %v2587
    %v2720 = vunpack.c.l.b16 %v2588
    %v2721 = vunpack.c.l.b16 %v2589
    %v2722 = vunpack.c.l.b16 %v2590
    %v2723 = vunpack.c.l.b16 %v2591
    %v2724 = vunpack.c.l.b16 %v2592
    %v2725 = vunpack.c.l.b16 %v2593
    %v2726 = vunpack.c.l.b16 %v2594
    %v2727 = vunpack.c.l.b16 %v2595
    %v2728 = vunpack.c.l.b16 %v2596
    %v2729 = vunpack.c.l.b16 %v2597
    %v2730 = vunpack.c.l.b16 %v2598
    %v2731 = vunpack.c.l.b16 %v2599
    %v2732 = vunpack.c.l.b16 %v2600
    %v2733 = vunpack.c.l.b16 %v2601
    %v2734 = vunpack.c.l.b16 %v2602
    %v2735 = vunpack.c.l.b16 %v2603
    %v2736 = vunpack.c.l.b16 %v2604
    %v2737 = vunpack.c.l.b16 %v2605
    %v2738 = vunpack.c.l.b16 %v2606
    %v2739 = vunpack.c.l.b16 %v2607
    %v2740 = vunpack.c.l.b16 %v2608
    %v2741 = vunpack.c.l.b16 %v2609
    %v2742 = vunpack.c.l.b16 %v2610
    %v2743 = vunpack.c.l.b16 %v2611
    %v2744 = vunpack.c.l.b16 %v2612
    %v2745 = vunpack.c.l.b16 %v2613
    %v2746 = vunpack.c.l.b16 %v2614
    %v2747 = vunpack.c.l.b16 %v2615
    %v2748 = vunpack.c.l.b16 %v2616
    %v2749 = vunpack.c.l.b16 %v2617
    %v2750 = vunpack.c.l.b16 %v2618
    %v2751 = vunpack.c.l.b16 %v2619
    %v2752 = vpack.c.b16 %v2689, %v2688
    %v2753 = vpack.c.b16 %v2691, %v2690
    %v2754 = vpack.c.b16 %v2693, %v2692
    %v2755 = vpack.c.b16 %v2695, %v2694
    %v2756 = vpack.c.b16 %v2697, %v2696
    %v2757 = vpack.c.b16 %v2699, %v2698
    %v2758 = vpack.c.b16 %v2701, %v2700
    %v2759 = vpack.c.b16 %v2703, %v2702
    %v2760 = vpack.c.b16 %v2705, %v2704
    %v2761 = vpack.c.b16 %v2707, %v2706
    %v2762 = vpack.c.b16 %v2709, %v2708
    %v2763 = vpack.c.b16 %v2711, %v2710
    %v2764 = vpack.c.b16 %v2713, %v2712
    %v2765 = vpack.c.b16 %v2715, %v2714
    %v2766 = vpack.c.b16 %v2717, %v2716
    %v2767 = vpack.c.b16 %v2719, %v2718
    %v2768 = vpack.c.b16 %v2721, %v2720
    %v2769 = vpack.c.b16 %v2723, %v2722
    %v2770 = vpack.c.b16 %v2725, %v2724
    %v2771 = vpack.c.b16 %v2727, %v2726
    %v2772 = vpack.c.b16 %v2729, %v2728
    %v2773 = vpack.c.b16 %v2731, %v2730
    %v2774 = vpack.c.b16 %v2733, %v2732
    %v2775 = vpack.c.b16 %v2735, %v2734
    %v2776 = vpack.c.b16 %v2737, %v2736
    %v2777 = vpack.c.b16 %v2739, %v2738
    %v2778 = vpack.c.b16 %v2741, %v2740
    %v2779 = vpack.c.b16 %v2743, %v2742
    %v2780 = vpack.c.b16 %v2745, %v2744
    %v2781 = vpack.c.b16 %v2747, %v2746
    %v2782 = vpack.c.b16 %v2749, %v2748
    %v2783 = vpack.c.b16 %v2751, %v2750
    %2816 = vmatpush.bf16.msra.mxu0 %v2759
    %2817 = vmatpush.bf16.msra.mxu0 %v2758
    %2818 = vmatpush.bf16.msra.mxu0 %v2757
    %2819 = vmatpush.bf16.msra.mxu0 %v2756
    %2820 = vmatpush.bf16.msra.mxu0 %v2755
    %2821 = vmatpush.bf16.msra.mxu0 %v2754
    %2822 = vmatpush.bf16.msra.mxu0 %v2753
    %2823 = vmatpush.bf16.msra.mxu0 %v2752
    %2824 = vmatmul.bf16.gmra.mxu0 %v2552
    %v2825 = vpop.f32.mrf.mxu0
    %v2826 = vadd.f32 %v2622, %v2825
    %v2827 = vpop.f32.mrf.mxu0
    %2828 = vdwg.mxu0
    %2829 = vmatpush.bf16.msra.mxu0 %v2767
    %2830 = vmatpush.bf16.msra.mxu0 %v2766
    %2831 = vmatpush.bf16.msra.mxu0 %v2765
    %2832 = vmatpush.bf16.msra.mxu0 %v2764
    %2833 = vmatpush.bf16.msra.mxu0 %v2763
    %2834 = vmatpush.bf16.msra.mxu0 %v2762
    %2835 = vmatpush.bf16.msra.mxu0 %v2761
    %2836 = vmatpush.bf16.msra.mxu0 %v2760
    %2837 = vmatmul.bf16.gmra.mxu0 %v2553
    %v2838 = vpop.f32.mrf.mxu0
    %v2839 = vadd.f32 %v2826, %v2838
    %v2840 = vpop.f32.mrf.mxu0
    %2841 = vdwg.mxu0
    %2842 = vmatpush.bf16.msra.mxu0 %v2775
    %2843 = vmatpush.bf16.msra.mxu0 %v2774
    %2844 = vmatpush.bf16.msra.mxu0 %v2773
    %2845 = vmatpush.bf16.msra.mxu0 %v2772
    %2846 = vmatpush.bf16.msra.mxu0 %v2771
    %2847 = vmatpush.bf16.msra.mxu0 %v2770
    %2848 = vmatpush.bf16.msra.mxu0 %v2769
    %2849 = vmatpush.bf16.msra.mxu0 %v2768
    %2850 = vmatmul.bf16.gmra.mxu0 %v2554
    %v2851 = vpop.f32.mrf.mxu0
    %v2852 = vadd.f32 %v2839, %v2851
    %v2853 = vpop.f32.mrf.mxu0
    %2854 = vdwg.mxu0
    %2855 = vmatpush.bf16.msra.mxu0 %v2783
    %2856 = vmatpush.bf16.msra.mxu0 %v2782
    %2857 = vmatpush.bf16.msra.mxu0 %v2781
    %2858 = vmatpush.bf16.msra.mxu0 %v2780
    %2859 = vmatpush.bf16.msra.mxu0 %v2779
    %2860 = vmatpush.bf16.msra.mxu0 %v2778
    %2861 = vmatpush.bf16.msra.mxu0 %v2777
    %2862 = vmatpush.bf16.msra.mxu0 %v2776
    %2863 = vmatmul.bf16.gmra.mxu0 %v2555
    %v2864 = vpop.f32.mrf.mxu0
    %v2865 = vadd.f32 %v2852, %v2864
    %v2866 = vpop.f32.mrf.mxu0
    %2867 = vdwg.mxu0
    %2868 = vst [vmem:[#allocation10] sm:$0xff] %v2865
    // Predicated region
    $region50: #{_mlp_forward_impl.1} parent=1 // pred_check
      _
    $region51: #{_mlp_forward_impl.1} parent=1 // pred_check_branch
      %2870 = sbr.rel (0) target = $region53
    $region52: #{_mlp_forward_impl.1} parent=1 // pred_region
      %2872 = vsyncadd [#allocation4], 0
      %s2874 = sshll.u32 [#allocation10], 4
      %s2875 = int_to_ptr.vmem [resolvable:$true] %s2874
      %s2876 = sshll.u32 %s8, 4
      %s2877 = int_to_ptr.hbm [resolvable:$true] %s2876
      %2879 = dma.vmem_to_hbm [thread:$0]  %s2875, 128, %s2877, [#allocation4]
    $region53: #{_mlp_forward_impl.1} parent=1 // pred_fallthru
      _
    // Predicated region
    $region54: #{_mlp_forward_impl.1} parent=1 // pred_check
      _
    $region55: #{_mlp_forward_impl.1} parent=1 // pred_check_branch
      %2881 = sbr.rel (0) target = $region57
    $region56: #{_mlp_forward_impl.1} parent=1 // pred_region
      %2883 = dma.done [#allocation4], 128
    $region57: #{_mlp_forward_impl.1} parent=1 // pred_fallthru
      _
    %2884 = vsyncpa [#allocation3], 1
    %2885 = vsyncpa [#allocation6], 1
    %2886 = vsyncpa [#allocation9], 1
    %2887 = vsyncpa [#allocation4], 1

</llo_original>
